<compile_context>
chip_gen: v6e
topology: v6e:2x2x1
jax: 0.10.0
libtpu: 0.0.40
codegen_flags: <defaults>
</compile_context>

<pallas_src>
import functools

import jax
import jax.numpy as jnp
from jax.experimental import pallas as pl
from jax.experimental.pallas import tpu as pltpu


# Above v5e's 16 MiB scoped default, comfortably under v7x's 64 MiB physical.
_VMEM_LIMIT = 48 * 1024 * 1024


def _round_up(v, m):
    return (v + m - 1) // m * m


def _spatial_tile(total, max_tile=2048):
    """Largest multiple-of-128 divisor of `total` that is <= max_tile.

    Falls back to the full extent when `total` is small or not 128-divisible
    (block shape then equals the full array dim, which is always legal).
    """
    if total <= max_tile or total % 128 != 0:
        return total
    t = max_tile - (max_tile % 128)
    while total % t != 0:
        t -= 128
    return t


# ---------------------------------------------------------------------------
# Kernel 1: 3x3 conv as 9 shifted MXU matmuls + per-image BN partial sums.
# Grid: (N,) -- one padded NHWC image per step.
#   y is written transposed & channel-trimmed: (Cout_p8, HoWo) in bf16,
#   so HBM traffic carries no 128-channel padding and stores are lane-dense.
# ---------------------------------------------------------------------------
def _conv_stats_kernel(x_ref, w_ref, y_ref, s_ref, sq_ref, *,
                       Ho, Wo, stride, c_store):
    x = x_ref[0]                                   # (Hp, Wp, Cin_p) compute dtype
    cin = x.shape[-1]
    hi = (Ho - 1) * stride + 1
    wi = (Wo - 1) * stride + 1

    acc = None
    for kh in range(3):                            # static unroll: 9 MXU calls
        for kw in range(3):
            win = x[kh:kh + hi:stride, kw:kw + wi:stride, :]   # (Ho, Wo, Cin_p)
            win = win.reshape(Ho * Wo, cin)                    # outer-dim merge
            part = jnp.dot(win, w_ref[kh * 3 + kw],
                           preferred_element_type=jnp.float32)  # f32 accum
            acc = part if acc is None else acc + part           # (HoWo, Cp)

    # BN partial sums from the f32 accumulator (before the bf16 cast of y).
    s_ref[0] = jnp.sum(acc, axis=0, keepdims=True)[:, :c_store]        # (1, C8)
    sq_ref[0] = jnp.sum(acc * acc, axis=0, keepdims=True)[:, :c_store]  # (1, C8)

    # Lane-padded (Cp=128k) accumulator -> transpose (tile-aligned) -> keep only
    # the first C8 channels -> bf16.  Spatial axis becomes the lane dim.
    y_ref[0] = jnp.transpose(acc)[:c_store, :].astype(y_ref.dtype)      # (C8, HoWo)


# ---------------------------------------------------------------------------
# Kernel 2: fused BN affine (+ ReLU) with precomputed per-channel scale/bias.
# Grid: (N, HoWo // Tm); tiles are (C8, Tm) with Tm lane-dense.
# ---------------------------------------------------------------------------
def _bn_act_kernel(y_ref, scale_ref, bias_ref, out_ref, *, apply_relu):
    y = y_ref[0].astype(jnp.float32)                     # (C8, Tm)
    out = y * scale_ref[...] + bias_ref[...]             # (C8,1) broadcast on lanes
    if apply_relu:
        out = jnp.maximum(out, 0.0)
    out_ref[0] = out.astype(out_ref.dtype)


def layer_forward(x_nchw, weight, gamma, beta, *, stride=1, last=False,
                  eps=1e-5, compute_dtype=jnp.bfloat16):
    """x_nchw: (N, Cin, H, W); weight: (Cout, Cin, 3, 3); gamma/beta: (Cout,)."""
    N, Cin, H, W = x_nchw.shape
    Cout = weight.shape[0]
    Ho = (H + 2 - 3) // stride + 1
    Wo = (W + 2 - 3) // stride + 1
    HoWo = Ho * Wo
    Hp, Wp = H + 2, W + 2

    Cin_p = _round_up(Cin, 8)       # sublane-friendly contraction dim
    Cp = _round_up(Cout, 128)       # MXU lane padding (compute only, never stored)
    C8 = _round_up(Cout, 8)         # storage channel padding (sublane dim of y/out)

    # ---- wrapper glue: NCHW -> NHWC, zero-pad spatial (padding=1) + channels,
    #      cast matmul operands to bf16 (accumulation stays f32 in-kernel) ----
    x = jnp.transpose(x_nchw, (0, 2, 3, 1))                       # (N, H, W, Cin)
    x_pad = jnp.pad(x, ((0, 0), (1, 1), (1, 1), (0, Cin_p - Cin))
                    ).astype(compute_dtype)                       # (N, Hp, Wp, Cin_p)

    # weight (Cout,Cin,3,3) -> (3,3,Cin,Cout) -> (9, Cin_p, Cp); tap = kh*3+kw
    w = jnp.transpose(weight, (2, 3, 1, 0)).reshape(9, Cin, Cout)
    w = jnp.pad(w, ((0, 0), (0, Cin_p - Cin), (0, Cp - Cout))).astype(compute_dtype)

    # ---- pass 1: conv + per-image partial BN stats -------------------------
    kernel1 = functools.partial(_conv_stats_kernel, Ho=Ho, Wo=Wo,
                                stride=stride, c_store=C8)
    y, s_part, sq_part = pl.pallas_call(
        kernel1,
        out_shape=(jax.ShapeDtypeStruct((N, C8, HoWo), compute_dtype),   # bf16 y
                   jax.ShapeDtypeStruct((N, 1, C8), jnp.float32),
                   jax.ShapeDtypeStruct((N, 1, C8), jnp.float32)),
        grid=(N,),
        in_specs=[
            pl.BlockSpec((1, Hp, Wp, Cin_p), lambda n: (n, 0, 0, 0)),
            pl.BlockSpec((9, Cin_p, Cp), lambda n: (0, 0, 0)),
        ],
        out_specs=(
            pl.BlockSpec((1, C8, HoWo), lambda n: (n, 0, 0)),
            pl.BlockSpec((1, 1, C8), lambda n: (n, 0, 0)),
            pl.BlockSpec((1, 1, C8), lambda n: (n, 0, 0)),
        ),
        compiler_params=pltpu.CompilerParams(
            dimension_semantics=("parallel",),
            vmem_limit_bytes=_VMEM_LIMIT),
    )(x_pad, w)

    # ---- tiny per-channel fold: mean/var -> fused scale & bias (f32) --------
    # TODO(synk): E[x^2]-E[x]^2 in f32 can cancel when |mean| >> std; switch to a
    #             per-tile mean-corrected accumulation if bit-close BN is needed.
    m_total = N * HoWo
    s = jnp.sum(s_part[:, 0, :], axis=0)                           # (C8,)
    sq = jnp.sum(sq_part[:, 0, :], axis=0)
    mean = s / m_total
    var = jnp.maximum(sq / m_total - mean * mean, 0.0)             # biased variance
    inv_std = jax.lax.rsqrt(var + eps)
    gamma_p = jnp.pad(gamma.astype(jnp.float32), (0, C8 - Cout))
    beta_p = jnp.pad(beta.astype(jnp.float32), (0, C8 - Cout))
    scale = (gamma_p * inv_std).reshape(C8, 1)                     # lane-broadcast
    bias = (beta_p - mean * gamma_p * inv_std).reshape(C8, 1)

    # ---- pass 2: normalize (+ relu), lane-dense spatial tiles ----------------
    Tm = _spatial_tile(HoWo)
    kernel2 = functools.partial(_bn_act_kernel, apply_relu=not last)
    out = pl.pallas_call(
        kernel2,
        out_shape=jax.ShapeDtypeStruct((N, C8, HoWo), x_nchw.dtype),
        grid=(N, HoWo // Tm),
        in_specs=[
            pl.BlockSpec((1, C8, Tm), lambda n, t: (n, 0, t)),
            pl.BlockSpec((C8, 1), lambda n, t: (0, 0)),
            pl.BlockSpec((C8, 1), lambda n, t: (0, 0)),
        ],
        out_specs=pl.BlockSpec((1, C8, Tm), lambda n, t: (n, 0, t)),
        compiler_params=pltpu.CompilerParams(
            dimension_semantics=("parallel", "parallel"),
            vmem_limit_bytes=_VMEM_LIMIT),
    )(y, scale, bias)

    # (N, C8, HoWo) is already channel-major: reshape straight to NCHW,
    # drop padded channels. No output-side transpose needed.
    return out.reshape(N, C8, Ho, Wo)[:, :Cout]


if __name__ == "__main__":
    key = jax.random.PRNGKey(0)
    k_x, k_w = jax.random.split(key)

    N, Cin, H, W = 2, 4, 16, 16
    Cout, stride, last = 8, 1, False

    x = jax.random.normal(k_x, (N, Cin, H, W), dtype=jnp.float32)
    # Conv2d weight (Cout, Cin, 3, 3), bias=False
    weight = jax.random.normal(k_w, (Cout, Cin, 3, 3), dtype=jnp.float32) * 0.1
    # BatchNorm2d default init: gamma=1, beta=0
    gamma = jnp.ones((Cout,), dtype=jnp.float32)
    beta = jnp.zeros((Cout,), dtype=jnp.float32)

    out = layer_forward(x, weight, gamma, beta, stride=stride, last=last)
    jax.block_until_ready(out)
    assert out.shape == (N, Cout, H // stride, W // stride)

    # pure-JAX reference (f32) -- generous tolerance for the bf16 MXU operands
    ref_conv = jax.lax.conv_general_dilated(
        x, weight, window_strides=(stride, stride), padding=((1, 1), (1, 1)),
        dimension_numbers=("NCHW", "OIHW", "NCHW"))
    mu = jnp.mean(ref_conv, axis=(0, 2, 3), keepdims=True)
    var = jnp.var(ref_conv, axis=(0, 2, 3), keepdims=True)
    ref = (ref_conv - mu) * jax.lax.rsqrt(var + 1e-5)
    ref = ref * gamma.reshape(1, -1, 1, 1) + beta.reshape(1, -1, 1, 1)
    if not last:
        ref = jnp.maximum(ref, 0.0)
    max_err = float(jnp.max(jnp.abs(out - ref)))
    assert jnp.allclose(out, ref, rtol=5e-2, atol=5e-2), max_err

    print("KERNEL_OK")
</pallas_src>

<mosaic_0001>
module attributes {stable_mosaic.version = 11 : i64} {
  func.func @_conv_stats_kernel(%arg0: i32, %arg1: memref<1x18x18x8xbf16, #tpu.memory_space<vmem>>, %arg2: memref<9x8x128xbf16, #tpu.memory_space<vmem>>, %arg3: memref<1x8x256xbf16, #tpu.memory_space<vmem>>, %arg4: memref<1x1x8xf32, #tpu.memory_space<vmem>>, %arg5: memref<1x1x8xf32, #tpu.memory_space<vmem>>) attributes {dimension_semantics = [#tpu.dimension_semantics<parallel>], iteration_bounds = array<i64: 2>, scalar_prefetch = 0 : i64, scratch_operands = 0 : i64, tpu.core_type = #tpu.core_type<tc>, window_params = [{transform_indices = @transform_0, window_bounds = array<i64: 1, 18, 18, 8>}, {pipeline_mode = #tpu.pipeline_mode<synchronous>, transform_indices = @transform_1, window_bounds = array<i64: 9, 8, 128>}, {transform_indices = @transform_2, window_bounds = array<i64: 1, 8, 256>}, {transform_indices = @transform_3, window_bounds = array<i64: 1, 1, 8>}, {transform_indices = @transform_4, window_bounds = array<i64: 1, 1, 8>}]} {
    %c0 = arith.constant 0 : index
    %c0_0 = arith.constant 0 : index
    %c0_1 = arith.constant 0 : index
    %c0_2 = arith.constant 0 : index
    %0 = vector.load %arg1[%c0, %c0_0, %c0_1, %c0_2] : memref<1x18x18x8xbf16, #tpu.memory_space<vmem>>, vector<1x18x18x8xbf16>
    %1 = vector.shape_cast %0 : vector<1x18x18x8xbf16> to vector<18x18x8xbf16>
    %2 = vector.extract_strided_slice %1 {offsets = [0, 0, 0], sizes = [16, 16, 8], strides = [1, 1, 1]} : vector<18x18x8xbf16> to vector<16x16x8xbf16>
    %3 = vector.shape_cast %2 : vector<16x16x8xbf16> to vector<256x8xbf16>
    %c0_3 = arith.constant 0 : index
    %c0_4 = arith.constant 0 : index
    %c0_5 = arith.constant 0 : index
    %4 = vector.load %arg2[%c0_3, %c0_4, %c0_5] : memref<9x8x128xbf16, #tpu.memory_space<vmem>>, vector<1x8x128xbf16>
    %5 = vector.shape_cast %4 : vector<1x8x128xbf16> to vector<8x128xbf16>
    %cst = arith.constant dense<0.000000e+00> : vector<256x128xf32>
    %6 = tpu.matmul %3, %5, %cst {dimension_numbers = #tpu.dot_dimension_numbers<[1], [0], [0], [1], [0, 0, 1, 1], [], []>} : vector<256x8xbf16>, vector<8x128xbf16>, vector<256x128xf32> -> vector<256x128xf32>
    %7 = vector.extract_strided_slice %1 {offsets = [0, 1, 0], sizes = [16, 16, 8], strides = [1, 1, 1]} : vector<18x18x8xbf16> to vector<16x16x8xbf16>
    %8 = vector.shape_cast %7 : vector<16x16x8xbf16> to vector<256x8xbf16>
    %c1 = arith.constant 1 : index
    %c0_6 = arith.constant 0 : index
    %c0_7 = arith.constant 0 : index
    %9 = vector.load %arg2[%c1, %c0_6, %c0_7] : memref<9x8x128xbf16, #tpu.memory_space<vmem>>, vector<1x8x128xbf16>
    %10 = vector.shape_cast %9 : vector<1x8x128xbf16> to vector<8x128xbf16>
    %cst_8 = arith.constant dense<0.000000e+00> : vector<256x128xf32>
    %11 = tpu.matmul %8, %10, %cst_8 {dimension_numbers = #tpu.dot_dimension_numbers<[1], [0], [0], [1], [0, 0, 1, 1], [], []>} : vector<256x8xbf16>, vector<8x128xbf16>, vector<256x128xf32> -> vector<256x128xf32>
    %12 = arith.addf %6, %11 : vector<256x128xf32>
    %13 = vector.extract_strided_slice %1 {offsets = [0, 2, 0], sizes = [16, 16, 8], strides = [1, 1, 1]} : vector<18x18x8xbf16> to vector<16x16x8xbf16>
    %14 = vector.shape_cast %13 : vector<16x16x8xbf16> to vector<256x8xbf16>
    %c2 = arith.constant 2 : index
    %c0_9 = arith.constant 0 : index
    %c0_10 = arith.constant 0 : index
    %15 = vector.load %arg2[%c2, %c0_9, %c0_10] : memref<9x8x128xbf16, #tpu.memory_space<vmem>>, vector<1x8x128xbf16>
    %16 = vector.shape_cast %15 : vector<1x8x128xbf16> to vector<8x128xbf16>
    %cst_11 = arith.constant dense<0.000000e+00> : vector<256x128xf32>
    %17 = tpu.matmul %14, %16, %cst_11 {dimension_numbers = #tpu.dot_dimension_numbers<[1], [0], [0], [1], [0, 0, 1, 1], [], []>} : vector<256x8xbf16>, vector<8x128xbf16>, vector<256x128xf32> -> vector<256x128xf32>
    %18 = arith.addf %12, %17 : vector<256x128xf32>
    %19 = vector.extract_strided_slice %1 {offsets = [1, 0, 0], sizes = [16, 16, 8], strides = [1, 1, 1]} : vector<18x18x8xbf16> to vector<16x16x8xbf16>
    %20 = vector.shape_cast %19 : vector<16x16x8xbf16> to vector<256x8xbf16>
    %c3 = arith.constant 3 : index
    %c0_12 = arith.constant 0 : index
    %c0_13 = arith.constant 0 : index
    %21 = vector.load %arg2[%c3, %c0_12, %c0_13] : memref<9x8x128xbf16, #tpu.memory_space<vmem>>, vector<1x8x128xbf16>
    %22 = vector.shape_cast %21 : vector<1x8x128xbf16> to vector<8x128xbf16>
    %cst_14 = arith.constant dense<0.000000e+00> : vector<256x128xf32>
    %23 = tpu.matmul %20, %22, %cst_14 {dimension_numbers = #tpu.dot_dimension_numbers<[1], [0], [0], [1], [0, 0, 1, 1], [], []>} : vector<256x8xbf16>, vector<8x128xbf16>, vector<256x128xf32> -> vector<256x128xf32>
    %24 = arith.addf %18, %23 : vector<256x128xf32>
    %25 = vector.extract_strided_slice %1 {offsets = [1, 1, 0], sizes = [16, 16, 8], strides = [1, 1, 1]} : vector<18x18x8xbf16> to vector<16x16x8xbf16>
    %26 = vector.shape_cast %25 : vector<16x16x8xbf16> to vector<256x8xbf16>
    %c4 = arith.constant 4 : index
    %c0_15 = arith.constant 0 : index
    %c0_16 = arith.constant 0 : index
    %27 = vector.load %arg2[%c4, %c0_15, %c0_16] : memref<9x8x128xbf16, #tpu.memory_space<vmem>>, vector<1x8x128xbf16>
    %28 = vector.shape_cast %27 : vector<1x8x128xbf16> to vector<8x128xbf16>
    %cst_17 = arith.constant dense<0.000000e+00> : vector<256x128xf32>
    %29 = tpu.matmul %26, %28, %cst_17 {dimension_numbers = #tpu.dot_dimension_numbers<[1], [0], [0], [1], [0, 0, 1, 1], [], []>} : vector<256x8xbf16>, vector<8x128xbf16>, vector<256x128xf32> -> vector<256x128xf32>
    %30 = arith.addf %24, %29 : vector<256x128xf32>
    %31 = vector.extract_strided_slice %1 {offsets = [1, 2, 0], sizes = [16, 16, 8], strides = [1, 1, 1]} : vector<18x18x8xbf16> to vector<16x16x8xbf16>
    %32 = vector.shape_cast %31 : vector<16x16x8xbf16> to vector<256x8xbf16>
    %c5 = arith.constant 5 : index
    %c0_18 = arith.constant 0 : index
    %c0_19 = arith.constant 0 : index
    %33 = vector.load %arg2[%c5, %c0_18, %c0_19] : memref<9x8x128xbf16, #tpu.memory_space<vmem>>, vector<1x8x128xbf16>
    %34 = vector.shape_cast %33 : vector<1x8x128xbf16> to vector<8x128xbf16>
    %cst_20 = arith.constant dense<0.000000e+00> : vector<256x128xf32>
    %35 = tpu.matmul %32, %34, %cst_20 {dimension_numbers = #tpu.dot_dimension_numbers<[1], [0], [0], [1], [0, 0, 1, 1], [], []>} : vector<256x8xbf16>, vector<8x128xbf16>, vector<256x128xf32> -> vector<256x128xf32>
    %36 = arith.addf %30, %35 : vector<256x128xf32>
    %37 = vector.extract_strided_slice %1 {offsets = [2, 0, 0], sizes = [16, 16, 8], strides = [1, 1, 1]} : vector<18x18x8xbf16> to vector<16x16x8xbf16>
    %38 = vector.shape_cast %37 : vector<16x16x8xbf16> to vector<256x8xbf16>
    %c6 = arith.constant 6 : index
    %c0_21 = arith.constant 0 : index
    %c0_22 = arith.constant 0 : index
    %39 = vector.load %arg2[%c6, %c0_21, %c0_22] : memref<9x8x128xbf16, #tpu.memory_space<vmem>>, vector<1x8x128xbf16>
    %40 = vector.shape_cast %39 : vector<1x8x128xbf16> to vector<8x128xbf16>
    %cst_23 = arith.constant dense<0.000000e+00> : vector<256x128xf32>
    %41 = tpu.matmul %38, %40, %cst_23 {dimension_numbers = #tpu.dot_dimension_numbers<[1], [0], [0], [1], [0, 0, 1, 1], [], []>} : vector<256x8xbf16>, vector<8x128xbf16>, vector<256x128xf32> -> vector<256x128xf32>
    %42 = arith.addf %36, %41 : vector<256x128xf32>
    %43 = vector.extract_strided_slice %1 {offsets = [2, 1, 0], sizes = [16, 16, 8], strides = [1, 1, 1]} : vector<18x18x8xbf16> to vector<16x16x8xbf16>
    %44 = vector.shape_cast %43 : vector<16x16x8xbf16> to vector<256x8xbf16>
    %c7 = arith.constant 7 : index
    %c0_24 = arith.constant 0 : index
    %c0_25 = arith.constant 0 : index
    %45 = vector.load %arg2[%c7, %c0_24, %c0_25] : memref<9x8x128xbf16, #tpu.memory_space<vmem>>, vector<1x8x128xbf16>
    %46 = vector.shape_cast %45 : vector<1x8x128xbf16> to vector<8x128xbf16>
    %cst_26 = arith.constant dense<0.000000e+00> : vector<256x128xf32>
    %47 = tpu.matmul %44, %46, %cst_26 {dimension_numbers = #tpu.dot_dimension_numbers<[1], [0], [0], [1], [0, 0, 1, 1], [], []>} : vector<256x8xbf16>, vector<8x128xbf16>, vector<256x128xf32> -> vector<256x128xf32>
    %48 = arith.addf %42, %47 : vector<256x128xf32>
    %49 = vector.extract_strided_slice %1 {offsets = [2, 2, 0], sizes = [16, 16, 8], strides = [1, 1, 1]} : vector<18x18x8xbf16> to vector<16x16x8xbf16>
    %50 = vector.shape_cast %49 : vector<16x16x8xbf16> to vector<256x8xbf16>
    %c8 = arith.constant 8 : index
    %c0_27 = arith.constant 0 : index
    %c0_28 = arith.constant 0 : index
    %51 = vector.load %arg2[%c8, %c0_27, %c0_28] : memref<9x8x128xbf16, #tpu.memory_space<vmem>>, vector<1x8x128xbf16>
    %52 = vector.shape_cast %51 : vector<1x8x128xbf16> to vector<8x128xbf16>
    %cst_29 = arith.constant dense<0.000000e+00> : vector<256x128xf32>
    %53 = tpu.matmul %50, %52, %cst_29 {dimension_numbers = #tpu.dot_dimension_numbers<[1], [0], [0], [1], [0, 0, 1, 1], [], []>} : vector<256x8xbf16>, vector<8x128xbf16>, vector<256x128xf32> -> vector<256x128xf32>
    %54 = arith.addf %48, %53 : vector<256x128xf32>
    %cst_30 = arith.constant dense<0.000000e+00> : vector<128xf32>
    %55 = vector.multi_reduction <add>, %54, %cst_30 [0] : vector<256x128xf32> to vector<128xf32>
    %56 = vector.shape_cast %55 : vector<128xf32> to vector<1x128xf32>
    %57 = vector.extract_strided_slice %56 {offsets = [0, 0], sizes = [1, 8], strides = [1, 1]} : vector<1x128xf32> to vector<1x8xf32>
    %c0_31 = arith.constant 0 : index
    %c0_32 = arith.constant 0 : index
    %c0_33 = arith.constant 0 : index
    %58 = vector.load %arg4[%c0_31, %c0_32, %c0_33] : memref<1x1x8xf32, #tpu.memory_space<vmem>>, vector<1x1x8xf32>
    %59 = vector.shape_cast %58 : vector<1x1x8xf32> to vector<1x8xf32>
    %60 = vector.shape_cast %57 : vector<1x8xf32> to vector<1x1x8xf32>
    tpu.vector_store %arg4[%c0_31, %c0_32, %c0_33], %60 {strides = array<i32>} : memref<1x1x8xf32, #tpu.memory_space<vmem>>, vector<1x1x8xf32>,
    %61 = arith.mulf %54, %54 : vector<256x128xf32>
    %cst_34 = arith.constant dense<0.000000e+00> : vector<128xf32>
    %62 = vector.multi_reduction <add>, %61, %cst_34 [0] : vector<256x128xf32> to vector<128xf32>
    %63 = vector.shape_cast %62 : vector<128xf32> to vector<1x128xf32>
    %64 = vector.extract_strided_slice %63 {offsets = [0, 0], sizes = [1, 8], strides = [1, 1]} : vector<1x128xf32> to vector<1x8xf32>
    %c0_35 = arith.constant 0 : index
    %c0_36 = arith.constant 0 : index
    %c0_37 = arith.constant 0 : index
    %65 = vector.load %arg5[%c0_35, %c0_36, %c0_37] : memref<1x1x8xf32, #tpu.memory_space<vmem>>, vector<1x1x8xf32>
    %66 = vector.shape_cast %65 : vector<1x1x8xf32> to vector<1x8xf32>
    %67 = vector.shape_cast %64 : vector<1x8xf32> to vector<1x1x8xf32>
    tpu.vector_store %arg5[%c0_35, %c0_36, %c0_37], %67 {strides = array<i32>} : memref<1x1x8xf32, #tpu.memory_space<vmem>>, vector<1x1x8xf32>,
    %68 = tpu.transpose %54, [1, 0] : vector<256x128xf32> -> vector<128x256xf32>
    %69 = vector.extract_strided_slice %68 {offsets = [0, 0], sizes = [8, 256], strides = [1, 1]} : vector<128x256xf32> to vector<8x256xf32>
    %70 = arith.truncf %69 : vector<8x256xf32> to vector<8x256xbf16>
    %c0_38 = arith.constant 0 : index
    %c0_39 = arith.constant 0 : index
    %c0_40 = arith.constant 0 : index
    %71 = vector.load %arg3[%c0_38, %c0_39, %c0_40] : memref<1x8x256xbf16, #tpu.memory_space<vmem>>, vector<1x8x256xbf16>
    %72 = vector.shape_cast %71 : vector<1x8x256xbf16> to vector<8x256xbf16>
    %73 = vector.shape_cast %70 : vector<8x256xbf16> to vector<1x8x256xbf16>
    tpu.vector_store %arg3[%c0_38, %c0_39, %c0_40], %73 {strides = array<i32>} : memref<1x8x256xbf16, #tpu.memory_space<vmem>>, vector<1x8x256xbf16>,
    return
  }
  func.func @transform_0(%arg0: i32) -> (i32, i32, i32, i32) {
    %c0_i32 = arith.constant 0 : i32
    %c0_i32_0 = arith.constant 0 : i32
    %c0_i32_1 = arith.constant 0 : i32
    %c0_i32_2 = arith.constant 0 : i32
    return %arg0, %c0_i32, %c0_i32_0, %c0_i32_1 : i32, i32, i32, i32
  }
  func.func @transform_1(%arg0: i32) -> (i32, i32, i32) {
    %c0_i32 = arith.constant 0 : i32
    %c0_i32_0 = arith.constant 0 : i32
    %c0_i32_1 = arith.constant 0 : i32
    %c0_i32_2 = arith.constant 0 : i32
    return %c0_i32, %c0_i32_0, %c0_i32_1 : i32, i32, i32
  }
  func.func @transform_2(%arg0: i32) -> (i32, i32, i32) {
    %c0_i32 = arith.constant 0 : i32
    %c0_i32_0 = arith.constant 0 : i32
    %c0_i32_1 = arith.constant 0 : i32
    return %arg0, %c0_i32, %c0_i32_0 : i32, i32, i32
  }
  func.func @transform_3(%arg0: i32) -> (i32, i32, i32) {
    %c0_i32 = arith.constant 0 : i32
    %c0_i32_0 = arith.constant 0 : i32
    %c0_i32_1 = arith.constant 0 : i32
    return %arg0, %c0_i32, %c0_i32_0 : i32, i32, i32
  }
  func.func @transform_4(%arg0: i32) -> (i32, i32, i32) {
    %c0_i32 = arith.constant 0 : i32
    %c0_i32_0 = arith.constant 0 : i32
    %c0_i32_1 = arith.constant 0 : i32
    return %arg0, %c0_i32, %c0_i32_0 : i32, i32, i32
  }
}

</mosaic_0001>

<llo_original>
// kernel: tpu_custom_call.1
$region0: #{tpu_custom_call.1}
  #allocation0 [shape = 'u32[]', space=smem, size = 0x4, offset = 0x4, fixed_abs, tag = 'smem constant byte address 0x4 - core index']
  #allocation1 [shape = 'u32[144,128]{1,0:T(1,128)}', space=vmem, size = 0x12000, scoped, tag = 'internal scratch']
  %s0 = inlined_call_operand.vmem [shape: bf16[2,18,18,8], index: 0, kind: input, shape index: {}]
  %s1 = inlined_call_operand.vmem [shape: bf16[9,8,128], index: 1, kind: input, shape index: {}]
  %s2 = inlined_call_operand.hbm [shape: bf16[2,8,256], index: 2, kind: output, shape index: {0}]
  %s3 = inlined_call_operand.hbm [shape: f32[2,1,8], index: 3, kind: output, shape index: {1}]
  %s4 = inlined_call_operand.hbm [shape: f32[2,1,8], index: 4, kind: output, shape index: {2}]
  %5 = xla_tuple %s2, %s3, %s4
  %s6 = sld [smem:[#allocation0]]
  $region57: #{tpu_custom_call.1} parent=0
    _
  %s8 = ssub.s32 1, %s6
  %s9 = scalar_select 0, %s8, %s6
  $region1: #{tpu_custom_call.1} parent=0
    #allocation2 [shape = 'u8[8192]{0}', space=vmem, size = 0x2000, scoped, tag = 'output window, operand 0']
    #allocation3 [shape = 's32[2]{0}', space=sflag, size = 0x8, scoped, tag = 'scoped memory for tpu_custom_call.1']
    #allocation4 [shape = 'u8[1024]{0}', space=vmem, size = 0x400, scoped, tag = 'output window, operand 1']
    #allocation5 [shape = 's32[2]{0}', space=sflag, size = 0x8, scoped, tag = 'scoped memory for tpu_custom_call.1']
    #allocation6 [shape = 'u8[1024]{0}', space=vmem, size = 0x400, scoped, tag = 'output window, operand 2']
    %10 = vsyncpa [#allocation3], 0
    %s11 = scalar_lea.sflag [#allocation3], 1
    %12 = vsyncpa %s11, 0
    %13 = vsyncpa [#allocation5], 0
    %s14 = scalar_lea.sflag [#allocation5], 1
    %15 = vsyncpa %s14, 0
    loop: start=0, step=1, limit=4
    $region2: #{tpu_custom_call.1} parent=1 // loop_pre_header
      _
    $region3: #{tpu_custom_call.1} parent=1 // loop_header
      %s17 = sphi 0, %s21
      %p18 = scmp.ge.s32.totalorder %s17, 4
      %s27 = sphi 0, %s29
      %s30 = sphi 0, %s27
      %s31 = sphi 0, %s30
      %s47 = sphi 0, %s31
      %s51 = sphi 0, %s51
      %s53 = sphi 0, %s51
      %s54 = sphi 0, %s53
      %s68 = sphi 0, %s54
      %s74 = sphi 0, %s76
      %s77 = sphi 0, %s74
      %s78 = sphi 0, %s77
      %s94 = sphi 0, %s78
      %s100 = sphi 0, %s102
      %s103 = sphi 0, %s100
      %s104 = sphi 0, %s103
      %s120 = sphi 0, %s104
      %s126 = sphi 0, %s128
      %s129 = sphi 0, %s126
      %s130 = sphi 0, %s129
      %s146 = sphi 0, %s130
    $region4: #{tpu_custom_call.1} parent=1 // loop_header_branch
      %20 = sbr.rel (%p18) target = $region8
    $region5: #{tpu_custom_call.1} parent=1 // loop_body
      %s22 = ssub.s32 %s17, 1
      %s23 = ssub.s32 %s17, 2
      %s24 = sadd.s32 %s17, 1
      %s25 = ssub.s32 %s17, %s24
      %p26 = scmp.eq.s32.totalorder %s25, 0
      %s28 = sadd.s32 %s27, 1
      %s29 = scalar_select %p26, %s27, %s28
      %p32 = pneg %p26
      %p33 = scmp.eq.s32.totalorder %s17, 1
      %p34 = por %p32, %p33
      %p35 = scmp.ne.s32.totalorder %s27, %s30
      %p36 = scmp.eq.s32.totalorder %s17, 0
      %p37 = por %p35, %p36
      %p38 = scmp.ne.s32.totalorder %s27, %s30
      %p39 = scmp.eq.s32.totalorder %s22, 1
      %p40 = por %p38, %p39
      %p41 = scmp.ne.s32.totalorder %s30, %s31
      %p42 = scmp.eq.s32.totalorder %s22, 0
      %p43 = por %p41, %p42
      %p44 = scmp.ne.s32.totalorder %s30, %s31
      %p45 = scmp.eq.s32.totalorder %s23, 1
      %p46 = por %p44, %p45
      %p48 = scmp.ne.s32.totalorder %s31, %s47
      %p49 = scmp.eq.s32.totalorder %s23, 0
      %p50 = por %p48, %p49
      %s52 = sadd.s32 %s51, 1
      %p55 = scmp.eq.s32.totalorder %s17, 1
      %p56 = scmp.ne.s32.totalorder %s51, %s53
      %p57 = scmp.eq.s32.totalorder %s17, 0
      %p58 = por %p56, %p57
      %p59 = scmp.ne.s32.totalorder %s51, %s53
      %p60 = scmp.eq.s32.totalorder %s22, 1
      %p61 = por %p59, %p60
      %p62 = scmp.ne.s32.totalorder %s53, %s54
      %p63 = scmp.eq.s32.totalorder %s22, 0
      %p64 = por %p62, %p63
      %p65 = scmp.ne.s32.totalorder %s53, %s54
      %p66 = scmp.eq.s32.totalorder %s23, 1
      %p67 = por %p65, %p66
      %p69 = scmp.ne.s32.totalorder %s54, %s68
      %p70 = scmp.eq.s32.totalorder %s23, 0
      %p71 = por %p69, %p70
      %s72 = ssub.s32 %s17, %s24
      %p73 = scmp.eq.s32.totalorder %s72, 0
      %s75 = sadd.s32 %s74, 1
      %s76 = scalar_select %p73, %s74, %s75
      %p79 = pneg %p73
      %p80 = scmp.eq.s32.totalorder %s17, 1
      %p81 = por %p79, %p80
      %p82 = scmp.ne.s32.totalorder %s74, %s77
      %p83 = scmp.eq.s32.totalorder %s17, 0
      %p84 = por %p82, %p83
      %p85 = scmp.ne.s32.totalorder %s74, %s77
      %p86 = scmp.eq.s32.totalorder %s22, 1
      %p87 = por %p85, %p86
      %p88 = scmp.ne.s32.totalorder %s77, %s78
      %p89 = scmp.eq.s32.totalorder %s22, 0
      %p90 = por %p88, %p89
      %p91 = scmp.ne.s32.totalorder %s77, %s78
      %p92 = scmp.eq.s32.totalorder %s23, 1
      %p93 = por %p91, %p92
      %p95 = scmp.ne.s32.totalorder %s78, %s94
      %p96 = scmp.eq.s32.totalorder %s23, 0
      %p97 = por %p95, %p96
      %s98 = ssub.s32 %s17, %s24
      %p99 = scmp.eq.s32.totalorder %s98, 0
      %s101 = sadd.s32 %s100, 1
      %s102 = scalar_select %p99, %s100, %s101
      %p105 = pneg %p99
      %p106 = scmp.eq.s32.totalorder %s17, 1
      %p107 = por %p105, %p106
      %p108 = scmp.ne.s32.totalorder %s100, %s103
      %p109 = scmp.eq.s32.totalorder %s17, 0
      %p110 = por %p108, %p109
      %p111 = scmp.ne.s32.totalorder %s100, %s103
      %p112 = scmp.eq.s32.totalorder %s22, 1
      %p113 = por %p111, %p112
      %p114 = scmp.ne.s32.totalorder %s103, %s104
      %p115 = scmp.eq.s32.totalorder %s22, 0
      %p116 = por %p114, %p115
      %p117 = scmp.ne.s32.totalorder %s103, %s104
      %p118 = scmp.eq.s32.totalorder %s23, 1
      %p119 = por %p117, %p118
      %p121 = scmp.ne.s32.totalorder %s104, %s120
      %p122 = scmp.eq.s32.totalorder %s23, 0
      %p123 = por %p121, %p122
      %s124 = ssub.s32 %s17, %s24
      %p125 = scmp.eq.s32.totalorder %s124, 0
      %s127 = sadd.s32 %s126, 1
      %s128 = scalar_select %p125, %s126, %s127
      %p131 = pneg %p125
      %p132 = scmp.eq.s32.totalorder %s17, 1
      %p133 = por %p131, %p132
      %p134 = scmp.ne.s32.totalorder %s126, %s129
      %p135 = scmp.eq.s32.totalorder %s17, 0
      %p136 = por %p134, %p135
      %p137 = scmp.ne.s32.totalorder %s126, %s129
      %p138 = scmp.eq.s32.totalorder %s22, 1
      %p139 = por %p137, %p138
      %p140 = scmp.ne.s32.totalorder %s129, %s130
      %p141 = scmp.eq.s32.totalorder %s22, 0
      %p142 = por %p140, %p141
      %p143 = scmp.ne.s32.totalorder %s129, %s130
      %p144 = scmp.eq.s32.totalorder %s23, 1
      %p145 = por %p143, %p144
      %p147 = scmp.ne.s32.totalorder %s130, %s146
      %p148 = scmp.eq.s32.totalorder %s23, 0
      %p149 = por %p147, %p148
      %p150 = scmp.le.s32.totalorder 1, %s17
      %p151 = scmp.lt.s32.totalorder %s17, 3
      %p152 = pnand %p150, %p151
      %p153 = pneg %p152
      // Predicated region
      $region9: #{tpu_custom_call.1} parent=5 // pred_check
        _
      $region10: #{tpu_custom_call.1} parent=5 // pred_check_branch
        %155 = sbr.rel (%p152) target = $region12
      $region11: #{tpu_custom_call.1} parent=5 // pred_region
        %s156 = ssub.s32 %s17, 1
        // Predicated region
        $region13: #{tpu_custom_call.1} parent=11 // pred_check
          %p157 = pneg %p64
        $region14: #{tpu_custom_call.1} parent=11 // pred_check_branch
          %159 = sbr.rel (%p157) target = $region16
        $region15: #{tpu_custom_call.1} parent=11 // pred_region
          _
        $region16: #{tpu_custom_call.1} parent=11 // pred_fallthru
          _
      $region12: #{tpu_custom_call.1} parent=5 // pred_fallthru
        _
      %p160 = scmp.lt.s32.totalorder %s17, 2
      // Predicated region
      $region17: #{tpu_custom_call.1} parent=5 // pred_check
        %p161 = pneg %p160
      $region18: #{tpu_custom_call.1} parent=5 // pred_check_branch
        %163 = sbr.rel (%p161) target = $region20
      $region19: #{tpu_custom_call.1} parent=5 // pred_region
        // Predicated region
        $region21: #{tpu_custom_call.1} parent=19 // pred_check
          %p164 = pneg %p37
        $region22: #{tpu_custom_call.1} parent=19 // pred_check_branch
          %166 = sbr.rel (%p164) target = $region24
        $region23: #{tpu_custom_call.1} parent=19 // pred_region
          %p167 = scmp.lt.s32.totalorder %s17, 1
          %s168 = scalar_select %p167, %s17, 1
          %s169 = smul.addr %s168, 54
          %s170 = smul.addr %s169, 4
          %s171 = scalar_lea.vmem %s0, %s170
        $region24: #{tpu_custom_call.1} parent=19 // pred_fallthru
          _
      $region20: #{tpu_custom_call.1} parent=5 // pred_fallthru
        _
      %p172 = scmp.le.s32.totalorder 1, %s17
      %p173 = scmp.lt.s32.totalorder %s17, 3
      %p174 = pnand %p172, %p173
      %p175 = pneg %p174
      // Predicated region
      $region25: #{tpu_custom_call.1} parent=5 // pred_check
        _
      $region26: #{tpu_custom_call.1} parent=5 // pred_check_branch
        %177 = sbr.rel (%p174) target = $region28
      $region27: #{tpu_custom_call.1} parent=5 // pred_region
        %s178 = ssub.s32 %s17, 1
        %p179 = scmp.lt.s32.totalorder %s22, 1
        %s180 = scalar_select %p179, %s22, 1
        %s181 = smul.addr %s180, 54
        %s182 = smul.addr %s181, 4
        %s183 = scalar_lea.vmem %s0, %s182
        %p184 = pneg %p43
        %p185 = pneg %p40
        %p186 = pneg %p64
        %p187 = pneg %p61
        %p188 = pneg %p90
        %p189 = pneg %p87
        %s190 = sand.u32 %s77, 1
        %s191 = scalar_lea.sflag [#allocation3], %s190
        %s192 = sand.u32 %s77, 1
        %s193 = smul.addr %s192, 8
        %s194 = scalar_lea.vmem [#allocation2], %s193
        %p195 = pneg %p116
        %p196 = pneg %p113
        %s197 = sand.u32 %s22, 1
        %s198 = scalar_lea.sflag [#allocation5], %s197
        %s199 = sand.u32 %s103, 1
        %s200 = scalar_lea.vmem [#allocation4], %s199
        %p201 = pneg %p142
        %p202 = pneg %p139
        %s203 = sand.u32 %s22, 1
        %s204 = scalar_lea.sflag [#allocation5], %s203
        %s205 = sand.u32 %s129, 1
        %s206 = scalar_lea.vmem [#allocation6], %s205
        %p207 = scmp.lt.s32.totalorder %s22, 1
        %s208 = scalar_select %p207, %s22, 1
        %s209 = smul.addr %s208, 54
        %s210 = smul.addr %s209, 4
        %s211 = scalar_lea.vmem %s0, %s210
        %v213 = vld [vmem:[%s211] sm:$0xf]
        %v214 = vld [vmem:[%s211 + $0x4] sm:$0xf]
        %v215 = vld [vmem:[%s211 + $0x8] sm:$0x1]
        %v216 = vld [vmem:[%s211 + $0xc] sm:$0xf]
        %v217 = vld [vmem:[%s211 + $0x10] sm:$0xf]
        %v218 = vld [vmem:[%s211 + $0x14] sm:$0x1]
        %v219 = vld [vmem:[%s211 + $0x18] sm:$0xf]
        %v220 = vld [vmem:[%s211 + $0x1c] sm:$0xf]
        %v221 = vld [vmem:[%s211 + $0x20] sm:$0x1]
        %v222 = vld [vmem:[%s211 + $0x24] sm:$0xf]
        %v223 = vld [vmem:[%s211 + $0x28] sm:$0xf]
        %v224 = vld [vmem:[%s211 + $0x2c] sm:$0x1]
        %v225 = vld [vmem:[%s211 + $0x30] sm:$0xf]
        %v226 = vld [vmem:[%s211 + $0x34] sm:$0xf]
        %v227 = vld [vmem:[%s211 + $0x38] sm:$0x1]
        %v228 = vld [vmem:[%s211 + $0x3c] sm:$0xf]
        %v229 = vld [vmem:[%s211 + $0x40] sm:$0xf]
        %v230 = vld [vmem:[%s211 + $0x44] sm:$0x1]
        %v231 = vld [vmem:[%s211 + $0x48] sm:$0xf]
        %v232 = vld [vmem:[%s211 + $0x4c] sm:$0xf]
        %v233 = vld [vmem:[%s211 + $0x50] sm:$0x1]
        %v234 = vld [vmem:[%s211 + $0x54] sm:$0xf]
        %v235 = vld [vmem:[%s211 + $0x58] sm:$0xf]
        %v236 = vld [vmem:[%s211 + $0x5c] sm:$0x1]
        %v237 = vld [vmem:[%s211 + $0x60] sm:$0xf]
        %v238 = vld [vmem:[%s211 + $0x64] sm:$0xf]
        %v239 = vld [vmem:[%s211 + $0x68] sm:$0x1]
        %v240 = vld [vmem:[%s211 + $0x6c] sm:$0xf]
        %v241 = vld [vmem:[%s211 + $0x70] sm:$0xf]
        %v242 = vld [vmem:[%s211 + $0x74] sm:$0x1]
        %v243 = vld [vmem:[%s211 + $0x78] sm:$0xf]
        %v244 = vld [vmem:[%s211 + $0x7c] sm:$0xf]
        %v245 = vld [vmem:[%s211 + $0x80] sm:$0x1]
        %v246 = vld [vmem:[%s211 + $0x84] sm:$0xf]
        %v247 = vld [vmem:[%s211 + $0x88] sm:$0xf]
        %v248 = vld [vmem:[%s211 + $0x8c] sm:$0x1]
        %v249 = vld [vmem:[%s211 + $0x90] sm:$0xf]
        %v250 = vld [vmem:[%s211 + $0x94] sm:$0xf]
        %v251 = vld [vmem:[%s211 + $0x98] sm:$0x1]
        %v252 = vld [vmem:[%s211 + $0x9c] sm:$0xf]
        %v253 = vld [vmem:[%s211 + $0xa0] sm:$0xf]
        %v254 = vld [vmem:[%s211 + $0xa4] sm:$0x1]
        %v255 = vld [vmem:[%s211 + $0xa8] sm:$0xf]
        %v256 = vld [vmem:[%s211 + $0xac] sm:$0xf]
        %v257 = vld [vmem:[%s211 + $0xb0] sm:$0x1]
        %v258 = vld [vmem:[%s211 + $0xb4] sm:$0xf]
        %v259 = vld [vmem:[%s211 + $0xb8] sm:$0xf]
        %v260 = vld [vmem:[%s211 + $0xbc] sm:$0x1]
        %v261 = vld [vmem:[%s211 + $0xc0] sm:$0xf]
        %v262 = vld [vmem:[%s211 + $0xc4] sm:$0xf]
        %v263 = vld [vmem:[%s211 + $0xc8] sm:$0x1]
        %v264 = vld [vmem:[%s211 + $0xcc] sm:$0xf]
        %v265 = vld [vmem:[%s211 + $0xd0] sm:$0xf]
        %v266 = vld [vmem:[%s211 + $0xd4] sm:$0x1]
        %v267 = vld [vmem:[%s1] sm:$0xf]
        %vm268 = vsmask.f32 3328
        %vm269 = vsmask.f32 7440
        %vm270 = vmor %vm268, %vm269
        %v272 = vshrl.u32 %v213, 16
        %v274 = vrot.slane %v272, 4
        %v275 = vshll.u32 %v213, 16
        %v277 = vrot.slane %v275, 5
        %v278 = vor.u32 %v274, %v277
        %v279 = vrot.slane %v278, 4
        %v281 = vshll.u32 %v214, 16
        %v283 = vrot.slane %v281, 5
        %v284 = vsel %vm270, %v279, %v283
        %v285 = vshrl.u32 %v214, 16
        %v287 = vrot.slane %v285, 4
        %v288 = vor.u32 %v287, %v283
        %v289 = vrot.slane %v288, 4
        %v291 = vshll.u32 %v215, 16
        %v293 = vrot.slane %v291, 5
        %v294 = vsel %vm270, %v289, %v293
        %v296 = vshrl.u32 %v216, 16
        %v298 = vrot.slane %v296, 4
        %v299 = vshll.u32 %v216, 16
        %v301 = vrot.slane %v299, 5
        %v302 = vor.u32 %v298, %v301
        %v303 = vrot.slane %v302, 4
        %v305 = vshll.u32 %v217, 16
        %v307 = vrot.slane %v305, 5
        %v308 = vsel %vm270, %v303, %v307
        %v309 = vshrl.u32 %v217, 16
        %v311 = vrot.slane %v309, 4
        %v312 = vor.u32 %v311, %v307
        %v313 = vrot.slane %v312, 4
        %v315 = vshll.u32 %v218, 16
        %v317 = vrot.slane %v315, 5
        %v318 = vsel %vm270, %v313, %v317
        %v320 = vshrl.u32 %v219, 16
        %v322 = vrot.slane %v320, 4
        %v323 = vshll.u32 %v219, 16
        %v325 = vrot.slane %v323, 5
        %v326 = vor.u32 %v322, %v325
        %v327 = vrot.slane %v326, 4
        %v329 = vshll.u32 %v220, 16
        %v331 = vrot.slane %v329, 5
        %v332 = vsel %vm270, %v327, %v331
        %v333 = vshrl.u32 %v220, 16
        %v335 = vrot.slane %v333, 4
        %v336 = vor.u32 %v335, %v331
        %v337 = vrot.slane %v336, 4
        %v339 = vshll.u32 %v221, 16
        %v341 = vrot.slane %v339, 5
        %v342 = vsel %vm270, %v337, %v341
        %v344 = vshrl.u32 %v222, 16
        %v346 = vrot.slane %v344, 4
        %v347 = vshll.u32 %v222, 16
        %v349 = vrot.slane %v347, 5
        %v350 = vor.u32 %v346, %v349
        %v351 = vrot.slane %v350, 4
        %v353 = vshll.u32 %v223, 16
        %v355 = vrot.slane %v353, 5
        %v356 = vsel %vm270, %v351, %v355
        %v357 = vshrl.u32 %v223, 16
        %v359 = vrot.slane %v357, 4
        %v360 = vor.u32 %v359, %v355
        %v361 = vrot.slane %v360, 4
        %v363 = vshll.u32 %v224, 16
        %v365 = vrot.slane %v363, 5
        %v366 = vsel %vm270, %v361, %v365
        %v368 = vshrl.u32 %v225, 16
        %v370 = vrot.slane %v368, 4
        %v371 = vshll.u32 %v225, 16
        %v373 = vrot.slane %v371, 5
        %v374 = vor.u32 %v370, %v373
        %v375 = vrot.slane %v374, 4
        %v377 = vshll.u32 %v226, 16
        %v379 = vrot.slane %v377, 5
        %v380 = vsel %vm270, %v375, %v379
        %v381 = vshrl.u32 %v226, 16
        %v383 = vrot.slane %v381, 4
        %v384 = vor.u32 %v383, %v379
        %v385 = vrot.slane %v384, 4
        %v387 = vshll.u32 %v227, 16
        %v389 = vrot.slane %v387, 5
        %v390 = vsel %vm270, %v385, %v389
        %v392 = vshrl.u32 %v228, 16
        %v394 = vrot.slane %v392, 4
        %v395 = vshll.u32 %v228, 16
        %v397 = vrot.slane %v395, 5
        %v398 = vor.u32 %v394, %v397
        %v399 = vrot.slane %v398, 4
        %v401 = vshll.u32 %v229, 16
        %v403 = vrot.slane %v401, 5
        %v404 = vsel %vm270, %v399, %v403
        %v405 = vshrl.u32 %v229, 16
        %v407 = vrot.slane %v405, 4
        %v408 = vor.u32 %v407, %v403
        %v409 = vrot.slane %v408, 4
        %v411 = vshll.u32 %v230, 16
        %v413 = vrot.slane %v411, 5
        %v414 = vsel %vm270, %v409, %v413
        %v416 = vshrl.u32 %v231, 16
        %v418 = vrot.slane %v416, 4
        %v419 = vshll.u32 %v231, 16
        %v421 = vrot.slane %v419, 5
        %v422 = vor.u32 %v418, %v421
        %v423 = vrot.slane %v422, 4
        %v425 = vshll.u32 %v232, 16
        %v427 = vrot.slane %v425, 5
        %v428 = vsel %vm270, %v423, %v427
        %v429 = vshrl.u32 %v232, 16
        %v431 = vrot.slane %v429, 4
        %v432 = vor.u32 %v431, %v427
        %v433 = vrot.slane %v432, 4
        %v435 = vshll.u32 %v233, 16
        %v437 = vrot.slane %v435, 5
        %v438 = vsel %vm270, %v433, %v437
        %v440 = vshrl.u32 %v234, 16
        %v442 = vrot.slane %v440, 4
        %v443 = vshll.u32 %v234, 16
        %v445 = vrot.slane %v443, 5
        %v446 = vor.u32 %v442, %v445
        %v447 = vrot.slane %v446, 4
        %v449 = vshll.u32 %v235, 16
        %v451 = vrot.slane %v449, 5
        %v452 = vsel %vm270, %v447, %v451
        %v453 = vshrl.u32 %v235, 16
        %v455 = vrot.slane %v453, 4
        %v456 = vor.u32 %v455, %v451
        %v457 = vrot.slane %v456, 4
        %v459 = vshll.u32 %v236, 16
        %v461 = vrot.slane %v459, 5
        %v462 = vsel %vm270, %v457, %v461
        %v464 = vshrl.u32 %v237, 16
        %v466 = vrot.slane %v464, 4
        %v467 = vshll.u32 %v237, 16
        %v469 = vrot.slane %v467, 5
        %v470 = vor.u32 %v466, %v469
        %v471 = vrot.slane %v470, 4
        %v473 = vshll.u32 %v238, 16
        %v475 = vrot.slane %v473, 5
        %v476 = vsel %vm270, %v471, %v475
        %v477 = vshrl.u32 %v238, 16
        %v479 = vrot.slane %v477, 4
        %v480 = vor.u32 %v479, %v475
        %v481 = vrot.slane %v480, 4
        %v483 = vshll.u32 %v239, 16
        %v485 = vrot.slane %v483, 5
        %v486 = vsel %vm270, %v481, %v485
        %v488 = vshrl.u32 %v240, 16
        %v490 = vrot.slane %v488, 4
        %v491 = vshll.u32 %v240, 16
        %v493 = vrot.slane %v491, 5
        %v494 = vor.u32 %v490, %v493
        %v495 = vrot.slane %v494, 4
        %v497 = vshll.u32 %v241, 16
        %v499 = vrot.slane %v497, 5
        %v500 = vsel %vm270, %v495, %v499
        %v501 = vshrl.u32 %v241, 16
        %v503 = vrot.slane %v501, 4
        %v504 = vor.u32 %v503, %v499
        %v505 = vrot.slane %v504, 4
        %v507 = vshll.u32 %v242, 16
        %v509 = vrot.slane %v507, 5
        %v510 = vsel %vm270, %v505, %v509
        %v512 = vshrl.u32 %v243, 16
        %v514 = vrot.slane %v512, 4
        %v515 = vshll.u32 %v243, 16
        %v517 = vrot.slane %v515, 5
        %v518 = vor.u32 %v514, %v517
        %v519 = vrot.slane %v518, 4
        %v521 = vshll.u32 %v244, 16
        %v523 = vrot.slane %v521, 5
        %v524 = vsel %vm270, %v519, %v523
        %v525 = vshrl.u32 %v244, 16
        %v527 = vrot.slane %v525, 4
        %v528 = vor.u32 %v527, %v523
        %v529 = vrot.slane %v528, 4
        %v531 = vshll.u32 %v245, 16
        %v533 = vrot.slane %v531, 5
        %v534 = vsel %vm270, %v529, %v533
        %v536 = vshrl.u32 %v246, 16
        %v538 = vrot.slane %v536, 4
        %v539 = vshll.u32 %v246, 16
        %v541 = vrot.slane %v539, 5
        %v542 = vor.u32 %v538, %v541
        %v543 = vrot.slane %v542, 4
        %v545 = vshll.u32 %v247, 16
        %v547 = vrot.slane %v545, 5
        %v548 = vsel %vm270, %v543, %v547
        %v549 = vshrl.u32 %v247, 16
        %v551 = vrot.slane %v549, 4
        %v552 = vor.u32 %v551, %v547
        %v553 = vrot.slane %v552, 4
        %v555 = vshll.u32 %v248, 16
        %v557 = vrot.slane %v555, 5
        %v558 = vsel %vm270, %v553, %v557
        %v560 = vshrl.u32 %v249, 16
        %v562 = vrot.slane %v560, 4
        %v563 = vshll.u32 %v249, 16
        %v565 = vrot.slane %v563, 5
        %v566 = vor.u32 %v562, %v565
        %v567 = vrot.slane %v566, 4
        %v569 = vshll.u32 %v250, 16
        %v571 = vrot.slane %v569, 5
        %v572 = vsel %vm270, %v567, %v571
        %v573 = vshrl.u32 %v250, 16
        %v575 = vrot.slane %v573, 4
        %v576 = vor.u32 %v575, %v571
        %v577 = vrot.slane %v576, 4
        %v579 = vshll.u32 %v251, 16
        %v581 = vrot.slane %v579, 5
        %v582 = vsel %vm270, %v577, %v581
        %v584 = vshrl.u32 %v252, 16
        %v586 = vrot.slane %v584, 4
        %v587 = vshll.u32 %v252, 16
        %v589 = vrot.slane %v587, 5
        %v590 = vor.u32 %v586, %v589
        %v591 = vrot.slane %v590, 4
        %v593 = vshll.u32 %v253, 16
        %v595 = vrot.slane %v593, 5
        %v596 = vsel %vm270, %v591, %v595
        %v597 = vshrl.u32 %v253, 16
        %v599 = vrot.slane %v597, 4
        %v600 = vor.u32 %v599, %v595
        %v601 = vrot.slane %v600, 4
        %v603 = vshll.u32 %v254, 16
        %v605 = vrot.slane %v603, 5
        %v606 = vsel %vm270, %v601, %v605
        %v608 = vshrl.u32 %v255, 16
        %v610 = vrot.slane %v608, 4
        %v611 = vshll.u32 %v255, 16
        %v613 = vrot.slane %v611, 5
        %v614 = vor.u32 %v610, %v613
        %v615 = vrot.slane %v614, 4
        %v617 = vshll.u32 %v256, 16
        %v619 = vrot.slane %v617, 5
        %v620 = vsel %vm270, %v615, %v619
        %v621 = vshrl.u32 %v256, 16
        %v623 = vrot.slane %v621, 4
        %v624 = vor.u32 %v623, %v619
        %v625 = vrot.slane %v624, 4
        %v627 = vshll.u32 %v257, 16
        %v629 = vrot.slane %v627, 5
        %v630 = vsel %vm270, %v625, %v629
        %v632 = vshrl.u32 %v258, 16
        %v634 = vrot.slane %v632, 4
        %v635 = vshll.u32 %v258, 16
        %v637 = vrot.slane %v635, 5
        %v638 = vor.u32 %v634, %v637
        %v639 = vrot.slane %v638, 4
        %v641 = vshll.u32 %v259, 16
        %v643 = vrot.slane %v641, 5
        %v644 = vsel %vm270, %v639, %v643
        %v645 = vshrl.u32 %v259, 16
        %v647 = vrot.slane %v645, 4
        %v648 = vor.u32 %v647, %v643
        %v649 = vrot.slane %v648, 4
        %v651 = vshll.u32 %v260, 16
        %v653 = vrot.slane %v651, 5
        %v654 = vsel %vm270, %v649, %v653
        %s655 = scalar_lea.vmem %s1, 4
        %v656 = vld [vmem:[%s655] sm:$0xf]
        %v657 = vunpack.c.l.b16 %v284
        %v658 = vunpack.c.l.b16 %v294
        %v659 = vunpack.c.l.b16 %v308
        %v660 = vunpack.c.l.b16 %v318
        %v661 = vunpack.c.l.b16 %v332
        %v662 = vunpack.c.l.b16 %v342
        %v663 = vunpack.c.l.b16 %v356
        %v664 = vunpack.c.l.b16 %v366
        %v665 = vunpack.c.l.b16 %v380
        %v666 = vunpack.c.l.b16 %v390
        %v667 = vunpack.c.l.b16 %v404
        %v668 = vunpack.c.l.b16 %v414
        %v669 = vunpack.c.l.b16 %v428
        %v670 = vunpack.c.l.b16 %v438
        %v671 = vunpack.c.l.b16 %v452
        %v672 = vunpack.c.l.b16 %v462
        %v673 = vunpack.c.l.b16 %v476
        %v674 = vunpack.c.l.b16 %v486
        %v675 = vunpack.c.l.b16 %v500
        %v676 = vunpack.c.l.b16 %v510
        %v677 = vunpack.c.l.b16 %v524
        %v678 = vunpack.c.l.b16 %v534
        %v679 = vunpack.c.l.b16 %v548
        %v680 = vunpack.c.l.b16 %v558
        %v681 = vunpack.c.l.b16 %v572
        %v682 = vunpack.c.l.b16 %v582
        %v683 = vunpack.c.l.b16 %v596
        %v684 = vunpack.c.l.b16 %v606
        %v685 = vunpack.c.l.b16 %v620
        %v686 = vunpack.c.l.b16 %v630
        %v687 = vunpack.c.l.b16 %v644
        %v688 = vunpack.c.l.b16 %v654
        %v689 = vpack.c.b16 %v658, %v657
        %v690 = vpack.c.b16 %v660, %v659
        %v691 = vpack.c.b16 %v662, %v661
        %v692 = vpack.c.b16 %v664, %v663
        %v693 = vpack.c.b16 %v666, %v665
        %v694 = vpack.c.b16 %v668, %v667
        %v695 = vpack.c.b16 %v670, %v669
        %v696 = vpack.c.b16 %v672, %v671
        %v697 = vpack.c.b16 %v674, %v673
        %v698 = vpack.c.b16 %v676, %v675
        %v699 = vpack.c.b16 %v678, %v677
        %v700 = vpack.c.b16 %v680, %v679
        %v701 = vpack.c.b16 %v682, %v681
        %v702 = vpack.c.b16 %v684, %v683
        %v703 = vpack.c.b16 %v686, %v685
        %v704 = vpack.c.b16 %v688, %v687
        %vm705 = vcmask 64512
        %v707 = vsel %vm705, %v689, 0
        %v710 = vsel %vm705, %v690, 0
        %v713 = vsel %vm705, %v691, 0
        %v716 = vsel %vm705, %v692, 0
        %v719 = vsel %vm705, %v693, 0
        %v722 = vsel %vm705, %v694, 0
        %v725 = vsel %vm705, %v695, 0
        %v728 = vsel %vm705, %v696, 0
        %v731 = vsel %vm705, %v697, 0
        %v734 = vsel %vm705, %v698, 0
        %v737 = vsel %vm705, %v699, 0
        %v740 = vsel %vm705, %v700, 0
        %v743 = vsel %vm705, %v701, 0
        %v746 = vsel %vm705, %v702, 0
        %v749 = vsel %vm705, %v703, 0
        %v752 = vsel %vm705, %v704, 0
        %vm754 = vcmask 1043456
        %v756 = vsel %vm754, %v656, 0
        %758 = vmatprep.subr.bf16.mxu0 0
        %759 = vmatpush1.bf16.msra.mxu0 0
        %760 = vmatprep.subr.bf16.mxu0 0
        %761 = vmatpush1.bf16.msra.mxu0 0
        %762 = vmatprep.subr.bf16.mxu0 0
        %763 = vmatpush1.bf16.msra.mxu0 0
        %764 = vmatprep.subr.bf16.mxu0 0
        %765 = vmatpush1.bf16.msra.mxu0 0
        %766 = vmatprep.subr.bf16.mxu0 0
        %767 = vmatpush1.bf16.msra.mxu0 0
        %768 = vmatprep.subr.bf16.mxu0 0
        %769 = vmatpush1.bf16.msra.mxu0 0
        %770 = vmatprep.subr.bf16.mxu0 0
        %771 = vmatpush1.bf16.msra.mxu0 0
        %772 = vmatprep.subr.bf16.mxu0 0
        %773 = vmatpush1.bf16.msra.mxu0 %v756
        %774 = vmatprep.subr.bf16.mxu0 0
        %775 = vmatpush2.bf16.msra.mxu0 0
        %776 = vmatprep.subr.bf16.mxu0 0
        %777 = vmatpush2.bf16.msra.mxu0 0
        %778 = vmatprep.subr.bf16.mxu0 0
        %779 = vmatpush2.bf16.msra.mxu0 0
        %780 = vmatprep.subr.bf16.mxu0 0
        %781 = vmatpush2.bf16.msra.mxu0 0
        %782 = vmatprep.subr.bf16.mxu0 0
        %783 = vmatpush2.bf16.msra.mxu0 0
        %784 = vmatprep.subr.bf16.mxu0 0
        %785 = vmatpush2.bf16.msra.mxu0 0
        %786 = vmatprep.subr.bf16.mxu0 0
        %787 = vmatpush2.bf16.msra.mxu0 0
        %788 = vmatprep.subr.bf16.mxu0 0
        %789 = vmatpush2.bf16.msra.mxu0 0
        %790 = vmatprep.mubr.bf16.mxu0 0
        %791 = vmatmul.mubr.bf16.gmra.mxu0 %v707
        %v792 = vpop.f32.mrf.mxu0
        %v793 = vadd.f32 0.0, %v792
        %v794 = vpop.f32.mrf.mxu0
        %v795 = vpop.f32.mrf.mxu0
        %v796 = vadd.f32 0.0, %v795
        %v797 = vpop.f32.mrf.mxu0
        %798 = vmatprep.mubr.bf16.mxu0 0
        %799 = vmatmul.mubr.bf16.gmra.mxu0 %v710
        %v800 = vpop.f32.mrf.mxu0
        %v801 = vadd.f32 0.0, %v800
        %v802 = vpop.f32.mrf.mxu0
        %v803 = vpop.f32.mrf.mxu0
        %v804 = vadd.f32 0.0, %v803
        %v805 = vpop.f32.mrf.mxu0
        %806 = vmatprep.mubr.bf16.mxu0 0
        %807 = vmatmul.mubr.bf16.gmra.mxu0 %v713
        %v808 = vpop.f32.mrf.mxu0
        %v809 = vadd.f32 0.0, %v808
        %v810 = vpop.f32.mrf.mxu0
        %v811 = vpop.f32.mrf.mxu0
        %v812 = vadd.f32 0.0, %v811
        %v813 = vpop.f32.mrf.mxu0
        %814 = vmatprep.mubr.bf16.mxu0 0
        %815 = vmatmul.mubr.bf16.gmra.mxu0 %v716
        %v816 = vpop.f32.mrf.mxu0
        %v817 = vadd.f32 0.0, %v816
        %v818 = vpop.f32.mrf.mxu0
        %v819 = vpop.f32.mrf.mxu0
        %v820 = vadd.f32 0.0, %v819
        %v821 = vpop.f32.mrf.mxu0
        %822 = vmatprep.mubr.bf16.mxu0 0
        %823 = vmatmul.mubr.bf16.gmra.mxu0 %v719
        %v824 = vpop.f32.mrf.mxu0
        %v825 = vadd.f32 0.0, %v824
        %v826 = vpop.f32.mrf.mxu0
        %v827 = vpop.f32.mrf.mxu0
        %v828 = vadd.f32 0.0, %v827
        %v829 = vpop.f32.mrf.mxu0
        %830 = vmatprep.mubr.bf16.mxu0 0
        %831 = vmatmul.mubr.bf16.gmra.mxu0 %v722
        %v832 = vpop.f32.mrf.mxu0
        %v833 = vadd.f32 0.0, %v832
        %v834 = vpop.f32.mrf.mxu0
        %v835 = vpop.f32.mrf.mxu0
        %v836 = vadd.f32 0.0, %v835
        %v837 = vpop.f32.mrf.mxu0
        %838 = vmatprep.mubr.bf16.mxu0 0
        %839 = vmatmul.mubr.bf16.gmra.mxu0 %v725
        %v840 = vpop.f32.mrf.mxu0
        %v841 = vadd.f32 0.0, %v840
        %v842 = vpop.f32.mrf.mxu0
        %v843 = vpop.f32.mrf.mxu0
        %v844 = vadd.f32 0.0, %v843
        %v845 = vpop.f32.mrf.mxu0
        %846 = vmatprep.mubr.bf16.mxu0 0
        %847 = vmatmul.mubr.bf16.gmra.mxu0 %v728
        %v848 = vpop.f32.mrf.mxu0
        %v849 = vadd.f32 0.0, %v848
        %v850 = vpop.f32.mrf.mxu0
        %v851 = vpop.f32.mrf.mxu0
        %v852 = vadd.f32 0.0, %v851
        %v853 = vpop.f32.mrf.mxu0
        %854 = vmatprep.mubr.bf16.mxu0 0
        %855 = vmatmul.mubr.bf16.gmra.mxu0 %v731
        %v856 = vpop.f32.mrf.mxu0
        %v857 = vadd.f32 0.0, %v856
        %v858 = vpop.f32.mrf.mxu0
        %v859 = vpop.f32.mrf.mxu0
        %v860 = vadd.f32 0.0, %v859
        %v861 = vpop.f32.mrf.mxu0
        %862 = vmatprep.mubr.bf16.mxu0 0
        %863 = vmatmul.mubr.bf16.gmra.mxu0 %v734
        %v864 = vpop.f32.mrf.mxu0
        %v865 = vadd.f32 0.0, %v864
        %v866 = vpop.f32.mrf.mxu0
        %v867 = vpop.f32.mrf.mxu0
        %v868 = vadd.f32 0.0, %v867
        %v869 = vpop.f32.mrf.mxu0
        %870 = vmatprep.mubr.bf16.mxu0 0
        %871 = vmatmul.mubr.bf16.gmra.mxu0 %v737
        %v872 = vpop.f32.mrf.mxu0
        %v873 = vadd.f32 0.0, %v872
        %v874 = vpop.f32.mrf.mxu0
        %v875 = vpop.f32.mrf.mxu0
        %v876 = vadd.f32 0.0, %v875
        %v877 = vpop.f32.mrf.mxu0
        %878 = vmatprep.mubr.bf16.mxu0 0
        %879 = vmatmul.mubr.bf16.gmra.mxu0 %v740
        %v880 = vpop.f32.mrf.mxu0
        %v881 = vadd.f32 0.0, %v880
        %v882 = vpop.f32.mrf.mxu0
        %v883 = vpop.f32.mrf.mxu0
        %v884 = vadd.f32 0.0, %v883
        %v885 = vpop.f32.mrf.mxu0
        %886 = vmatprep.mubr.bf16.mxu0 0
        %887 = vmatmul.mubr.bf16.gmra.mxu0 %v743
        %v888 = vpop.f32.mrf.mxu0
        %v889 = vadd.f32 0.0, %v888
        %v890 = vpop.f32.mrf.mxu0
        %v891 = vpop.f32.mrf.mxu0
        %v892 = vadd.f32 0.0, %v891
        %v893 = vpop.f32.mrf.mxu0
        %894 = vmatprep.mubr.bf16.mxu0 0
        %895 = vmatmul.mubr.bf16.gmra.mxu0 %v746
        %v896 = vpop.f32.mrf.mxu0
        %v897 = vadd.f32 0.0, %v896
        %v898 = vpop.f32.mrf.mxu0
        %v899 = vpop.f32.mrf.mxu0
        %v900 = vadd.f32 0.0, %v899
        %v901 = vpop.f32.mrf.mxu0
        %902 = vmatprep.mubr.bf16.mxu0 0
        %903 = vmatmul.mubr.bf16.gmra.mxu0 %v749
        %v904 = vpop.f32.mrf.mxu0
        %v905 = vadd.f32 0.0, %v904
        %v906 = vpop.f32.mrf.mxu0
        %v907 = vpop.f32.mrf.mxu0
        %v908 = vadd.f32 0.0, %v907
        %v909 = vpop.f32.mrf.mxu0
        %910 = vmatprep.mubr.bf16.mxu0 0
        %911 = vmatmul.mubr.bf16.gmra.mxu0 %v752
        %v912 = vpop.f32.mrf.mxu0
        %v913 = vadd.f32 0.0, %v912
        %v914 = vpop.f32.mrf.mxu0
        %v915 = vpop.f32.mrf.mxu0
        %v916 = vadd.f32 0.0, %v915
        %v917 = vpop.f32.mrf.mxu0
        %918 = vdwg.mxu0
        %v951 = vunpack.c.l.b16 %v213
        %v952 = vunpack.c.l.b16 %v214
        %v953 = vunpack.c.l.b16 %v216
        %v954 = vunpack.c.l.b16 %v217
        %v955 = vunpack.c.l.b16 %v219
        %v956 = vunpack.c.l.b16 %v220
        %v957 = vunpack.c.l.b16 %v222
        %v958 = vunpack.c.l.b16 %v223
        %v959 = vunpack.c.l.b16 %v225
        %v960 = vunpack.c.l.b16 %v226
        %v961 = vunpack.c.l.b16 %v228
        %v962 = vunpack.c.l.b16 %v229
        %v963 = vunpack.c.l.b16 %v231
        %v964 = vunpack.c.l.b16 %v232
        %v965 = vunpack.c.l.b16 %v234
        %v966 = vunpack.c.l.b16 %v235
        %v967 = vunpack.c.l.b16 %v237
        %v968 = vunpack.c.l.b16 %v238
        %v969 = vunpack.c.l.b16 %v240
        %v970 = vunpack.c.l.b16 %v241
        %v971 = vunpack.c.l.b16 %v243
        %v972 = vunpack.c.l.b16 %v244
        %v973 = vunpack.c.l.b16 %v246
        %v974 = vunpack.c.l.b16 %v247
        %v975 = vunpack.c.l.b16 %v249
        %v976 = vunpack.c.l.b16 %v250
        %v977 = vunpack.c.l.b16 %v252
        %v978 = vunpack.c.l.b16 %v253
        %v979 = vunpack.c.l.b16 %v255
        %v980 = vunpack.c.l.b16 %v256
        %v981 = vunpack.c.l.b16 %v258
        %v982 = vunpack.c.l.b16 %v259
        %v983 = vpack.c.b16 %v952, %v951
        %v984 = vpack.c.b16 %v954, %v953
        %v985 = vpack.c.b16 %v956, %v955
        %v986 = vpack.c.b16 %v958, %v957
        %v987 = vpack.c.b16 %v960, %v959
        %v988 = vpack.c.b16 %v962, %v961
        %v989 = vpack.c.b16 %v964, %v963
        %v990 = vpack.c.b16 %v966, %v965
        %v991 = vpack.c.b16 %v968, %v967
        %v992 = vpack.c.b16 %v970, %v969
        %v993 = vpack.c.b16 %v972, %v971
        %v994 = vpack.c.b16 %v974, %v973
        %v995 = vpack.c.b16 %v976, %v975
        %v996 = vpack.c.b16 %v978, %v977
        %v997 = vpack.c.b16 %v980, %v979
        %v998 = vpack.c.b16 %v982, %v981
        %v1000 = vsel %vm705, %v983, 0
        %v1003 = vsel %vm705, %v984, 0
        %v1006 = vsel %vm705, %v985, 0
        %v1009 = vsel %vm705, %v986, 0
        %v1012 = vsel %vm705, %v987, 0
        %v1015 = vsel %vm705, %v988, 0
        %v1018 = vsel %vm705, %v989, 0
        %v1021 = vsel %vm705, %v990, 0
        %v1024 = vsel %vm705, %v991, 0
        %v1027 = vsel %vm705, %v992, 0
        %v1030 = vsel %vm705, %v993, 0
        %v1033 = vsel %vm705, %v994, 0
        %v1036 = vsel %vm705, %v995, 0
        %v1039 = vsel %vm705, %v996, 0
        %v1042 = vsel %vm705, %v997, 0
        %v1045 = vsel %vm705, %v998, 0
        %v1048 = vsel %vm754, %v267, 0
        %1050 = vmatprep.subr.bf16.mxu0 0
        %1051 = vmatpush1.bf16.msra.mxu0 0
        %1052 = vmatprep.subr.bf16.mxu0 0
        %1053 = vmatpush1.bf16.msra.mxu0 0
        %1054 = vmatprep.subr.bf16.mxu0 0
        %1055 = vmatpush1.bf16.msra.mxu0 0
        %1056 = vmatprep.subr.bf16.mxu0 0
        %1057 = vmatpush1.bf16.msra.mxu0 0
        %1058 = vmatprep.subr.bf16.mxu0 0
        %1059 = vmatpush1.bf16.msra.mxu0 0
        %1060 = vmatprep.subr.bf16.mxu0 0
        %1061 = vmatpush1.bf16.msra.mxu0 0
        %1062 = vmatprep.subr.bf16.mxu0 0
        %1063 = vmatpush1.bf16.msra.mxu0 0
        %1064 = vmatprep.subr.bf16.mxu0 0
        %1065 = vmatpush1.bf16.msra.mxu0 %v1048
        %1066 = vmatprep.subr.bf16.mxu0 0
        %1067 = vmatpush2.bf16.msra.mxu0 0
        %1068 = vmatprep.subr.bf16.mxu0 0
        %1069 = vmatpush2.bf16.msra.mxu0 0
        %1070 = vmatprep.subr.bf16.mxu0 0
        %1071 = vmatpush2.bf16.msra.mxu0 0
        %1072 = vmatprep.subr.bf16.mxu0 0
        %1073 = vmatpush2.bf16.msra.mxu0 0
        %1074 = vmatprep.subr.bf16.mxu0 0
        %1075 = vmatpush2.bf16.msra.mxu0 0
        %1076 = vmatprep.subr.bf16.mxu0 0
        %1077 = vmatpush2.bf16.msra.mxu0 0
        %1078 = vmatprep.subr.bf16.mxu0 0
        %1079 = vmatpush2.bf16.msra.mxu0 0
        %1080 = vmatprep.subr.bf16.mxu0 0
        %1081 = vmatpush2.bf16.msra.mxu0 0
        %1082 = vmatprep.mubr.bf16.mxu0 0
        %1083 = vmatmul.mubr.bf16.gmra.mxu0 %v1000
        %v1084 = vpop.f32.mrf.mxu0
        %v1085 = vadd.f32 %v793, %v1084
        %v1086 = vpop.f32.mrf.mxu0
        %v1087 = vpop.f32.mrf.mxu0
        %v1088 = vadd.f32 %v796, %v1087
        %v1089 = vpop.f32.mrf.mxu0
        %1090 = vmatprep.mubr.bf16.mxu0 0
        %1091 = vmatmul.mubr.bf16.gmra.mxu0 %v1003
        %v1092 = vpop.f32.mrf.mxu0
        %v1093 = vadd.f32 %v801, %v1092
        %v1094 = vpop.f32.mrf.mxu0
        %v1095 = vpop.f32.mrf.mxu0
        %v1096 = vadd.f32 %v804, %v1095
        %v1097 = vpop.f32.mrf.mxu0
        %1098 = vmatprep.mubr.bf16.mxu0 0
        %1099 = vmatmul.mubr.bf16.gmra.mxu0 %v1006
        %v1100 = vpop.f32.mrf.mxu0
        %v1101 = vadd.f32 %v809, %v1100
        %v1102 = vpop.f32.mrf.mxu0
        %v1103 = vpop.f32.mrf.mxu0
        %v1104 = vadd.f32 %v812, %v1103
        %v1105 = vpop.f32.mrf.mxu0
        %1106 = vmatprep.mubr.bf16.mxu0 0
        %1107 = vmatmul.mubr.bf16.gmra.mxu0 %v1009
        %v1108 = vpop.f32.mrf.mxu0
        %v1109 = vadd.f32 %v817, %v1108
        %v1110 = vpop.f32.mrf.mxu0
        %v1111 = vpop.f32.mrf.mxu0
        %v1112 = vadd.f32 %v820, %v1111
        %v1113 = vpop.f32.mrf.mxu0
        %1114 = vmatprep.mubr.bf16.mxu0 0
        %1115 = vmatmul.mubr.bf16.gmra.mxu0 %v1012
        %v1116 = vpop.f32.mrf.mxu0
        %v1117 = vadd.f32 %v825, %v1116
        %v1118 = vpop.f32.mrf.mxu0
        %v1119 = vpop.f32.mrf.mxu0
        %v1120 = vadd.f32 %v828, %v1119
        %v1121 = vpop.f32.mrf.mxu0
        %1122 = vmatprep.mubr.bf16.mxu0 0
        %1123 = vmatmul.mubr.bf16.gmra.mxu0 %v1015
        %v1124 = vpop.f32.mrf.mxu0
        %v1125 = vadd.f32 %v833, %v1124
        %v1126 = vpop.f32.mrf.mxu0
        %v1127 = vpop.f32.mrf.mxu0
        %v1128 = vadd.f32 %v836, %v1127
        %v1129 = vpop.f32.mrf.mxu0
        %1130 = vmatprep.mubr.bf16.mxu0 0
        %1131 = vmatmul.mubr.bf16.gmra.mxu0 %v1018
        %v1132 = vpop.f32.mrf.mxu0
        %v1133 = vadd.f32 %v841, %v1132
        %v1134 = vpop.f32.mrf.mxu0
        %v1135 = vpop.f32.mrf.mxu0
        %v1136 = vadd.f32 %v844, %v1135
        %v1137 = vpop.f32.mrf.mxu0
        %1138 = vmatprep.mubr.bf16.mxu0 0
        %1139 = vmatmul.mubr.bf16.gmra.mxu0 %v1021
        %v1140 = vpop.f32.mrf.mxu0
        %v1141 = vadd.f32 %v849, %v1140
        %v1142 = vpop.f32.mrf.mxu0
        %v1143 = vpop.f32.mrf.mxu0
        %v1144 = vadd.f32 %v852, %v1143
        %v1145 = vpop.f32.mrf.mxu0
        %1146 = vmatprep.mubr.bf16.mxu0 0
        %1147 = vmatmul.mubr.bf16.gmra.mxu0 %v1024
        %v1148 = vpop.f32.mrf.mxu0
        %v1149 = vadd.f32 %v857, %v1148
        %v1150 = vpop.f32.mrf.mxu0
        %v1151 = vpop.f32.mrf.mxu0
        %v1152 = vadd.f32 %v860, %v1151
        %v1153 = vpop.f32.mrf.mxu0
        %1154 = vmatprep.mubr.bf16.mxu0 0
        %1155 = vmatmul.mubr.bf16.gmra.mxu0 %v1027
        %v1156 = vpop.f32.mrf.mxu0
        %v1157 = vadd.f32 %v865, %v1156
        %v1158 = vpop.f32.mrf.mxu0
        %v1159 = vpop.f32.mrf.mxu0
        %v1160 = vadd.f32 %v868, %v1159
        %v1161 = vpop.f32.mrf.mxu0
        %1162 = vmatprep.mubr.bf16.mxu0 0
        %1163 = vmatmul.mubr.bf16.gmra.mxu0 %v1030
        %v1164 = vpop.f32.mrf.mxu0
        %v1165 = vadd.f32 %v873, %v1164
        %v1166 = vpop.f32.mrf.mxu0
        %v1167 = vpop.f32.mrf.mxu0
        %v1168 = vadd.f32 %v876, %v1167
        %v1169 = vpop.f32.mrf.mxu0
        %1170 = vmatprep.mubr.bf16.mxu0 0
        %1171 = vmatmul.mubr.bf16.gmra.mxu0 %v1033
        %v1172 = vpop.f32.mrf.mxu0
        %v1173 = vadd.f32 %v881, %v1172
        %v1174 = vpop.f32.mrf.mxu0
        %v1175 = vpop.f32.mrf.mxu0
        %v1176 = vadd.f32 %v884, %v1175
        %v1177 = vpop.f32.mrf.mxu0
        %1178 = vmatprep.mubr.bf16.mxu0 0
        %1179 = vmatmul.mubr.bf16.gmra.mxu0 %v1036
        %v1180 = vpop.f32.mrf.mxu0
        %v1181 = vadd.f32 %v889, %v1180
        %v1182 = vpop.f32.mrf.mxu0
        %v1183 = vpop.f32.mrf.mxu0
        %v1184 = vadd.f32 %v892, %v1183
        %v1185 = vpop.f32.mrf.mxu0
        %1186 = vmatprep.mubr.bf16.mxu0 0
        %1187 = vmatmul.mubr.bf16.gmra.mxu0 %v1039
        %v1188 = vpop.f32.mrf.mxu0
        %v1189 = vadd.f32 %v897, %v1188
        %v1190 = vpop.f32.mrf.mxu0
        %v1191 = vpop.f32.mrf.mxu0
        %v1192 = vadd.f32 %v900, %v1191
        %v1193 = vpop.f32.mrf.mxu0
        %1194 = vmatprep.mubr.bf16.mxu0 0
        %1195 = vmatmul.mubr.bf16.gmra.mxu0 %v1042
        %v1196 = vpop.f32.mrf.mxu0
        %v1197 = vadd.f32 %v905, %v1196
        %v1198 = vpop.f32.mrf.mxu0
        %v1199 = vpop.f32.mrf.mxu0
        %v1200 = vadd.f32 %v908, %v1199
        %v1201 = vpop.f32.mrf.mxu0
        %1202 = vmatprep.mubr.bf16.mxu0 0
        %1203 = vmatmul.mubr.bf16.gmra.mxu0 %v1045
        %v1204 = vpop.f32.mrf.mxu0
        %v1205 = vadd.f32 %v913, %v1204
        %v1206 = vpop.f32.mrf.mxu0
        %v1207 = vpop.f32.mrf.mxu0
        %v1208 = vadd.f32 %v916, %v1207
        %v1209 = vpop.f32.mrf.mxu0
        %1210 = vdwg.mxu0
        %vm1227 = vcmask 1042432
        %vm1228 = vcmask 1046532
        %vm1229 = vmor %vm1227, %vm1228
        %v1230 = vrot.slane %v213, 5
        %v1231 = vrot.slane %v1230, 4
        %v1232 = vrot.slane %v214, 5
        %v1233 = vsel %vm1229, %v1231, %v1232
        %v1234 = vrot.slane %v1232, 4
        %v1235 = vrot.slane %v215, 5
        %v1236 = vsel %vm1229, %v1234, %v1235
        %v1237 = vrot.slane %v216, 5
        %v1238 = vrot.slane %v1237, 4
        %v1239 = vrot.slane %v217, 5
        %v1240 = vsel %vm1229, %v1238, %v1239
        %v1241 = vrot.slane %v1239, 4
        %v1242 = vrot.slane %v218, 5
        %v1243 = vsel %vm1229, %v1241, %v1242
        %v1244 = vrot.slane %v219, 5
        %v1245 = vrot.slane %v1244, 4
        %v1246 = vrot.slane %v220, 5
        %v1247 = vsel %vm1229, %v1245, %v1246
        %v1248 = vrot.slane %v1246, 4
        %v1249 = vrot.slane %v221, 5
        %v1250 = vsel %vm1229, %v1248, %v1249
        %v1251 = vrot.slane %v222, 5
        %v1252 = vrot.slane %v1251, 4
        %v1253 = vrot.slane %v223, 5
        %v1254 = vsel %vm1229, %v1252, %v1253
        %v1255 = vrot.slane %v1253, 4
        %v1256 = vrot.slane %v224, 5
        %v1257 = vsel %vm1229, %v1255, %v1256
        %v1258 = vrot.slane %v225, 5
        %v1259 = vrot.slane %v1258, 4
        %v1260 = vrot.slane %v226, 5
        %v1261 = vsel %vm1229, %v1259, %v1260
        %v1262 = vrot.slane %v1260, 4
        %v1263 = vrot.slane %v227, 5
        %v1264 = vsel %vm1229, %v1262, %v1263
        %v1265 = vrot.slane %v228, 5
        %v1266 = vrot.slane %v1265, 4
        %v1267 = vrot.slane %v229, 5
        %v1268 = vsel %vm1229, %v1266, %v1267
        %v1269 = vrot.slane %v1267, 4
        %v1270 = vrot.slane %v230, 5
        %v1271 = vsel %vm1229, %v1269, %v1270
        %v1272 = vrot.slane %v231, 5
        %v1273 = vrot.slane %v1272, 4
        %v1274 = vrot.slane %v232, 5
        %v1275 = vsel %vm1229, %v1273, %v1274
        %v1276 = vrot.slane %v1274, 4
        %v1277 = vrot.slane %v233, 5
        %v1278 = vsel %vm1229, %v1276, %v1277
        %v1279 = vrot.slane %v234, 5
        %v1280 = vrot.slane %v1279, 4
        %v1281 = vrot.slane %v235, 5
        %v1282 = vsel %vm1229, %v1280, %v1281
        %v1283 = vrot.slane %v1281, 4
        %v1284 = vrot.slane %v236, 5
        %v1285 = vsel %vm1229, %v1283, %v1284
        %v1286 = vrot.slane %v237, 5
        %v1287 = vrot.slane %v1286, 4
        %v1288 = vrot.slane %v238, 5
        %v1289 = vsel %vm1229, %v1287, %v1288
        %v1290 = vrot.slane %v1288, 4
        %v1291 = vrot.slane %v239, 5
        %v1292 = vsel %vm1229, %v1290, %v1291
        %v1293 = vrot.slane %v240, 5
        %v1294 = vrot.slane %v1293, 4
        %v1295 = vrot.slane %v241, 5
        %v1296 = vsel %vm1229, %v1294, %v1295
        %v1297 = vrot.slane %v1295, 4
        %v1298 = vrot.slane %v242, 5
        %v1299 = vsel %vm1229, %v1297, %v1298
        %v1300 = vrot.slane %v243, 5
        %v1301 = vrot.slane %v1300, 4
        %v1302 = vrot.slane %v244, 5
        %v1303 = vsel %vm1229, %v1301, %v1302
        %v1304 = vrot.slane %v1302, 4
        %v1305 = vrot.slane %v245, 5
        %v1306 = vsel %vm1229, %v1304, %v1305
        %v1307 = vrot.slane %v246, 5
        %v1308 = vrot.slane %v1307, 4
        %v1309 = vrot.slane %v247, 5
        %v1310 = vsel %vm1229, %v1308, %v1309
        %v1311 = vrot.slane %v1309, 4
        %v1312 = vrot.slane %v248, 5
        %v1313 = vsel %vm1229, %v1311, %v1312
        %v1314 = vrot.slane %v249, 5
        %v1315 = vrot.slane %v1314, 4
        %v1316 = vrot.slane %v250, 5
        %v1317 = vsel %vm1229, %v1315, %v1316
        %v1318 = vrot.slane %v1316, 4
        %v1319 = vrot.slane %v251, 5
        %v1320 = vsel %vm1229, %v1318, %v1319
        %v1321 = vrot.slane %v252, 5
        %v1322 = vrot.slane %v1321, 4
        %v1323 = vrot.slane %v253, 5
        %v1324 = vsel %vm1229, %v1322, %v1323
        %v1325 = vrot.slane %v1323, 4
        %v1326 = vrot.slane %v254, 5
        %v1327 = vsel %vm1229, %v1325, %v1326
        %v1328 = vrot.slane %v255, 5
        %v1329 = vrot.slane %v1328, 4
        %v1330 = vrot.slane %v256, 5
        %v1331 = vsel %vm1229, %v1329, %v1330
        %v1332 = vrot.slane %v1330, 4
        %v1333 = vrot.slane %v257, 5
        %v1334 = vsel %vm1229, %v1332, %v1333
        %v1335 = vrot.slane %v258, 5
        %v1336 = vrot.slane %v1335, 4
        %v1337 = vrot.slane %v259, 5
        %v1338 = vsel %vm1229, %v1336, %v1337
        %v1339 = vrot.slane %v1337, 4
        %v1340 = vrot.slane %v260, 5
        %v1341 = vsel %vm1229, %v1339, %v1340
        %s1342 = scalar_lea.vmem %s1, 8
        %v1343 = vld [vmem:[%s1342] sm:$0xf]
        %v1344 = vunpack.c.l.b16 %v1233
        %v1345 = vunpack.c.l.b16 %v1236
        %v1346 = vunpack.c.l.b16 %v1240
        %v1347 = vunpack.c.l.b16 %v1243
        %v1348 = vunpack.c.l.b16 %v1247
        %v1349 = vunpack.c.l.b16 %v1250
        %v1350 = vunpack.c.l.b16 %v1254
        %v1351 = vunpack.c.l.b16 %v1257
        %v1352 = vunpack.c.l.b16 %v1261
        %v1353 = vunpack.c.l.b16 %v1264
        %v1354 = vunpack.c.l.b16 %v1268
        %v1355 = vunpack.c.l.b16 %v1271
        %v1356 = vunpack.c.l.b16 %v1275
        %v1357 = vunpack.c.l.b16 %v1278
        %v1358 = vunpack.c.l.b16 %v1282
        %v1359 = vunpack.c.l.b16 %v1285
        %v1360 = vunpack.c.l.b16 %v1289
        %v1361 = vunpack.c.l.b16 %v1292
        %v1362 = vunpack.c.l.b16 %v1296
        %v1363 = vunpack.c.l.b16 %v1299
        %v1364 = vunpack.c.l.b16 %v1303
        %v1365 = vunpack.c.l.b16 %v1306
        %v1366 = vunpack.c.l.b16 %v1310
        %v1367 = vunpack.c.l.b16 %v1313
        %v1368 = vunpack.c.l.b16 %v1317
        %v1369 = vunpack.c.l.b16 %v1320
        %v1370 = vunpack.c.l.b16 %v1324
        %v1371 = vunpack.c.l.b16 %v1327
        %v1372 = vunpack.c.l.b16 %v1331
        %v1373 = vunpack.c.l.b16 %v1334
        %v1374 = vunpack.c.l.b16 %v1338
        %v1375 = vunpack.c.l.b16 %v1341
        %v1376 = vpack.c.b16 %v1345, %v1344
        %v1377 = vpack.c.b16 %v1347, %v1346
        %v1378 = vpack.c.b16 %v1349, %v1348
        %v1379 = vpack.c.b16 %v1351, %v1350
        %v1380 = vpack.c.b16 %v1353, %v1352
        %v1381 = vpack.c.b16 %v1355, %v1354
        %v1382 = vpack.c.b16 %v1357, %v1356
        %v1383 = vpack.c.b16 %v1359, %v1358
        %v1384 = vpack.c.b16 %v1361, %v1360
        %v1385 = vpack.c.b16 %v1363, %v1362
        %v1386 = vpack.c.b16 %v1365, %v1364
        %v1387 = vpack.c.b16 %v1367, %v1366
        %v1388 = vpack.c.b16 %v1369, %v1368
        %v1389 = vpack.c.b16 %v1371, %v1370
        %v1390 = vpack.c.b16 %v1373, %v1372
        %v1391 = vpack.c.b16 %v1375, %v1374
        %v1393 = vsel %vm705, %v1376, 0
        %v1396 = vsel %vm705, %v1377, 0
        %v1399 = vsel %vm705, %v1378, 0
        %v1402 = vsel %vm705, %v1379, 0
        %v1405 = vsel %vm705, %v1380, 0
        %v1408 = vsel %vm705, %v1381, 0
        %v1411 = vsel %vm705, %v1382, 0
        %v1414 = vsel %vm705, %v1383, 0
        %v1417 = vsel %vm705, %v1384, 0
        %v1420 = vsel %vm705, %v1385, 0
        %v1423 = vsel %vm705, %v1386, 0
        %v1426 = vsel %vm705, %v1387, 0
        %v1429 = vsel %vm705, %v1388, 0
        %v1432 = vsel %vm705, %v1389, 0
        %v1435 = vsel %vm705, %v1390, 0
        %v1438 = vsel %vm705, %v1391, 0
        %v1441 = vsel %vm754, %v1343, 0
        %1443 = vmatprep.subr.bf16.mxu0 0
        %1444 = vmatpush1.bf16.msra.mxu0 0
        %1445 = vmatprep.subr.bf16.mxu0 0
        %1446 = vmatpush1.bf16.msra.mxu0 0
        %1447 = vmatprep.subr.bf16.mxu0 0
        %1448 = vmatpush1.bf16.msra.mxu0 0
        %1449 = vmatprep.subr.bf16.mxu0 0
        %1450 = vmatpush1.bf16.msra.mxu0 0
        %1451 = vmatprep.subr.bf16.mxu0 0
        %1452 = vmatpush1.bf16.msra.mxu0 0
        %1453 = vmatprep.subr.bf16.mxu0 0
        %1454 = vmatpush1.bf16.msra.mxu0 0
        %1455 = vmatprep.subr.bf16.mxu0 0
        %1456 = vmatpush1.bf16.msra.mxu0 0
        %1457 = vmatprep.subr.bf16.mxu0 0
        %1458 = vmatpush1.bf16.msra.mxu0 %v1441
        %1459 = vmatprep.subr.bf16.mxu0 0
        %1460 = vmatpush2.bf16.msra.mxu0 0
        %1461 = vmatprep.subr.bf16.mxu0 0
        %1462 = vmatpush2.bf16.msra.mxu0 0
        %1463 = vmatprep.subr.bf16.mxu0 0
        %1464 = vmatpush2.bf16.msra.mxu0 0
        %1465 = vmatprep.subr.bf16.mxu0 0
        %1466 = vmatpush2.bf16.msra.mxu0 0
        %1467 = vmatprep.subr.bf16.mxu0 0
        %1468 = vmatpush2.bf16.msra.mxu0 0
        %1469 = vmatprep.subr.bf16.mxu0 0
        %1470 = vmatpush2.bf16.msra.mxu0 0
        %1471 = vmatprep.subr.bf16.mxu0 0
        %1472 = vmatpush2.bf16.msra.mxu0 0
        %1473 = vmatprep.subr.bf16.mxu0 0
        %1474 = vmatpush2.bf16.msra.mxu0 0
        %1475 = vmatprep.mubr.bf16.mxu0 0
        %1476 = vmatmul.mubr.bf16.gmra.mxu0 %v1393
        %v1477 = vpop.f32.mrf.mxu0
        %v1478 = vadd.f32 0.0, %v1477
        %v1479 = vpop.f32.mrf.mxu0
        %v1480 = vpop.f32.mrf.mxu0
        %v1481 = vadd.f32 0.0, %v1480
        %v1482 = vpop.f32.mrf.mxu0
        %1483 = vmatprep.mubr.bf16.mxu0 0
        %1484 = vmatmul.mubr.bf16.gmra.mxu0 %v1396
        %v1485 = vpop.f32.mrf.mxu0
        %v1486 = vadd.f32 0.0, %v1485
        %v1487 = vpop.f32.mrf.mxu0
        %v1488 = vpop.f32.mrf.mxu0
        %v1489 = vadd.f32 0.0, %v1488
        %v1490 = vpop.f32.mrf.mxu0
        %1491 = vmatprep.mubr.bf16.mxu0 0
        %1492 = vmatmul.mubr.bf16.gmra.mxu0 %v1399
        %v1493 = vpop.f32.mrf.mxu0
        %v1494 = vadd.f32 0.0, %v1493
        %v1495 = vpop.f32.mrf.mxu0
        %v1496 = vpop.f32.mrf.mxu0
        %v1497 = vadd.f32 0.0, %v1496
        %v1498 = vpop.f32.mrf.mxu0
        %1499 = vmatprep.mubr.bf16.mxu0 0
        %1500 = vmatmul.mubr.bf16.gmra.mxu0 %v1402
        %v1501 = vpop.f32.mrf.mxu0
        %v1502 = vadd.f32 0.0, %v1501
        %v1503 = vpop.f32.mrf.mxu0
        %v1504 = vpop.f32.mrf.mxu0
        %v1505 = vadd.f32 0.0, %v1504
        %v1506 = vpop.f32.mrf.mxu0
        %1507 = vmatprep.mubr.bf16.mxu0 0
        %1508 = vmatmul.mubr.bf16.gmra.mxu0 %v1405
        %v1509 = vpop.f32.mrf.mxu0
        %v1510 = vadd.f32 0.0, %v1509
        %v1511 = vpop.f32.mrf.mxu0
        %v1512 = vpop.f32.mrf.mxu0
        %v1513 = vadd.f32 0.0, %v1512
        %v1514 = vpop.f32.mrf.mxu0
        %1515 = vmatprep.mubr.bf16.mxu0 0
        %1516 = vmatmul.mubr.bf16.gmra.mxu0 %v1408
        %v1517 = vpop.f32.mrf.mxu0
        %v1518 = vadd.f32 0.0, %v1517
        %v1519 = vpop.f32.mrf.mxu0
        %v1520 = vpop.f32.mrf.mxu0
        %v1521 = vadd.f32 0.0, %v1520
        %v1522 = vpop.f32.mrf.mxu0
        %1523 = vmatprep.mubr.bf16.mxu0 0
        %1524 = vmatmul.mubr.bf16.gmra.mxu0 %v1411
        %v1525 = vpop.f32.mrf.mxu0
        %v1526 = vadd.f32 0.0, %v1525
        %v1527 = vpop.f32.mrf.mxu0
        %v1528 = vpop.f32.mrf.mxu0
        %v1529 = vadd.f32 0.0, %v1528
        %v1530 = vpop.f32.mrf.mxu0
        %1531 = vmatprep.mubr.bf16.mxu0 0
        %1532 = vmatmul.mubr.bf16.gmra.mxu0 %v1414
        %v1533 = vpop.f32.mrf.mxu0
        %v1534 = vadd.f32 0.0, %v1533
        %v1535 = vpop.f32.mrf.mxu0
        %v1536 = vpop.f32.mrf.mxu0
        %v1537 = vadd.f32 0.0, %v1536
        %v1538 = vpop.f32.mrf.mxu0
        %1539 = vmatprep.mubr.bf16.mxu0 0
        %1540 = vmatmul.mubr.bf16.gmra.mxu0 %v1417
        %v1541 = vpop.f32.mrf.mxu0
        %v1542 = vadd.f32 0.0, %v1541
        %v1543 = vpop.f32.mrf.mxu0
        %v1544 = vpop.f32.mrf.mxu0
        %v1545 = vadd.f32 0.0, %v1544
        %v1546 = vpop.f32.mrf.mxu0
        %1547 = vmatprep.mubr.bf16.mxu0 0
        %1548 = vmatmul.mubr.bf16.gmra.mxu0 %v1420
        %v1549 = vpop.f32.mrf.mxu0
        %v1550 = vadd.f32 0.0, %v1549
        %v1551 = vpop.f32.mrf.mxu0
        %v1552 = vpop.f32.mrf.mxu0
        %v1553 = vadd.f32 0.0, %v1552
        %v1554 = vpop.f32.mrf.mxu0
        %1555 = vmatprep.mubr.bf16.mxu0 0
        %1556 = vmatmul.mubr.bf16.gmra.mxu0 %v1423
        %v1557 = vpop.f32.mrf.mxu0
        %v1558 = vadd.f32 0.0, %v1557
        %v1559 = vpop.f32.mrf.mxu0
        %v1560 = vpop.f32.mrf.mxu0
        %v1561 = vadd.f32 0.0, %v1560
        %v1562 = vpop.f32.mrf.mxu0
        %1563 = vmatprep.mubr.bf16.mxu0 0
        %1564 = vmatmul.mubr.bf16.gmra.mxu0 %v1426
        %v1565 = vpop.f32.mrf.mxu0
        %v1566 = vadd.f32 0.0, %v1565
        %v1567 = vpop.f32.mrf.mxu0
        %v1568 = vpop.f32.mrf.mxu0
        %v1569 = vadd.f32 0.0, %v1568
        %v1570 = vpop.f32.mrf.mxu0
        %1571 = vmatprep.mubr.bf16.mxu0 0
        %1572 = vmatmul.mubr.bf16.gmra.mxu0 %v1429
        %v1573 = vpop.f32.mrf.mxu0
        %v1574 = vadd.f32 0.0, %v1573
        %v1575 = vpop.f32.mrf.mxu0
        %v1576 = vpop.f32.mrf.mxu0
        %v1577 = vadd.f32 0.0, %v1576
        %v1578 = vpop.f32.mrf.mxu0
        %1579 = vmatprep.mubr.bf16.mxu0 0
        %1580 = vmatmul.mubr.bf16.gmra.mxu0 %v1432
        %v1581 = vpop.f32.mrf.mxu0
        %v1582 = vadd.f32 0.0, %v1581
        %v1583 = vpop.f32.mrf.mxu0
        %v1584 = vpop.f32.mrf.mxu0
        %v1585 = vadd.f32 0.0, %v1584
        %v1586 = vpop.f32.mrf.mxu0
        %1587 = vmatprep.mubr.bf16.mxu0 0
        %1588 = vmatmul.mubr.bf16.gmra.mxu0 %v1435
        %v1589 = vpop.f32.mrf.mxu0
        %v1590 = vadd.f32 0.0, %v1589
        %v1591 = vpop.f32.mrf.mxu0
        %v1592 = vpop.f32.mrf.mxu0
        %v1593 = vadd.f32 0.0, %v1592
        %v1594 = vpop.f32.mrf.mxu0
        %1595 = vmatprep.mubr.bf16.mxu0 0
        %1596 = vmatmul.mubr.bf16.gmra.mxu0 %v1438
        %v1597 = vpop.f32.mrf.mxu0
        %v1598 = vadd.f32 0.0, %v1597
        %v1599 = vpop.f32.mrf.mxu0
        %v1600 = vpop.f32.mrf.mxu0
        %v1601 = vadd.f32 0.0, %v1600
        %v1602 = vpop.f32.mrf.mxu0
        %1603 = vdwg.mxu0
        %v1604 = vadd.f32 %v1085, %v1478
        %v1605 = vadd.f32 %v1088, %v1481
        %v1606 = vadd.f32 %v1093, %v1486
        %v1607 = vadd.f32 %v1096, %v1489
        %v1608 = vadd.f32 %v1101, %v1494
        %v1609 = vadd.f32 %v1104, %v1497
        %v1610 = vadd.f32 %v1109, %v1502
        %v1611 = vadd.f32 %v1112, %v1505
        %v1612 = vadd.f32 %v1117, %v1510
        %v1613 = vadd.f32 %v1120, %v1513
        %v1614 = vadd.f32 %v1125, %v1518
        %v1615 = vadd.f32 %v1128, %v1521
        %v1616 = vadd.f32 %v1133, %v1526
        %v1617 = vadd.f32 %v1136, %v1529
        %v1618 = vadd.f32 %v1141, %v1534
        %v1619 = vadd.f32 %v1144, %v1537
        %v1620 = vadd.f32 %v1149, %v1542
        %v1621 = vadd.f32 %v1152, %v1545
        %v1622 = vadd.f32 %v1157, %v1550
        %v1623 = vadd.f32 %v1160, %v1553
        %v1624 = vadd.f32 %v1165, %v1558
        %v1625 = vadd.f32 %v1168, %v1561
        %v1626 = vadd.f32 %v1173, %v1566
        %v1627 = vadd.f32 %v1176, %v1569
        %v1628 = vadd.f32 %v1181, %v1574
        %v1629 = vadd.f32 %v1184, %v1577
        %v1630 = vadd.f32 %v1189, %v1582
        %v1631 = vadd.f32 %v1192, %v1585
        %v1632 = vadd.f32 %v1197, %v1590
        %v1633 = vadd.f32 %v1200, %v1593
        %v1634 = vadd.f32 %v1205, %v1598
        %v1635 = vadd.f32 %v1208, %v1601
        %s1636 = scalar_lea.vmem %s1, 12
        %v1637 = vld [vmem:[%s1636] sm:$0xf]
        %v1640 = vunpack.c.l.b16 %v261
        %v1641 = vunpack.c.l.b16 %v262
        %v1642 = vpack.c.b16 %v1641, %v1640
        %v1644 = vsel %vm705, %v1642, 0
        %v1647 = vsel %vm754, %v1637, 0
        %1649 = vmatprep.subr.bf16.mxu0 0
        %1650 = vmatpush1.bf16.msra.mxu0 0
        %1651 = vmatprep.subr.bf16.mxu0 0
        %1652 = vmatpush1.bf16.msra.mxu0 0
        %1653 = vmatprep.subr.bf16.mxu0 0
        %1654 = vmatpush1.bf16.msra.mxu0 0
        %1655 = vmatprep.subr.bf16.mxu0 0
        %1656 = vmatpush1.bf16.msra.mxu0 0
        %1657 = vmatprep.subr.bf16.mxu0 0
        %1658 = vmatpush1.bf16.msra.mxu0 0
        %1659 = vmatprep.subr.bf16.mxu0 0
        %1660 = vmatpush1.bf16.msra.mxu0 0
        %1661 = vmatprep.subr.bf16.mxu0 0
        %1662 = vmatpush1.bf16.msra.mxu0 0
        %1663 = vmatprep.subr.bf16.mxu0 0
        %1664 = vmatpush1.bf16.msra.mxu0 %v1647
        %1665 = vmatprep.subr.bf16.mxu0 0
        %1666 = vmatpush2.bf16.msra.mxu0 0
        %1667 = vmatprep.subr.bf16.mxu0 0
        %1668 = vmatpush2.bf16.msra.mxu0 0
        %1669 = vmatprep.subr.bf16.mxu0 0
        %1670 = vmatpush2.bf16.msra.mxu0 0
        %1671 = vmatprep.subr.bf16.mxu0 0
        %1672 = vmatpush2.bf16.msra.mxu0 0
        %1673 = vmatprep.subr.bf16.mxu0 0
        %1674 = vmatpush2.bf16.msra.mxu0 0
        %1675 = vmatprep.subr.bf16.mxu0 0
        %1676 = vmatpush2.bf16.msra.mxu0 0
        %1677 = vmatprep.subr.bf16.mxu0 0
        %1678 = vmatpush2.bf16.msra.mxu0 0
        %1679 = vmatprep.subr.bf16.mxu0 0
        %1680 = vmatpush2.bf16.msra.mxu0 0
        %1681 = vmatprep.mubr.bf16.mxu0 0
        %1682 = vmatmul.mubr.bf16.gmra.mxu0 %v1003
        %v1683 = vpop.f32.mrf.mxu0
        %v1684 = vadd.f32 0.0, %v1683
        %v1685 = vpop.f32.mrf.mxu0
        %v1686 = vpop.f32.mrf.mxu0
        %v1687 = vadd.f32 0.0, %v1686
        %v1688 = vpop.f32.mrf.mxu0
        %1689 = vmatprep.mubr.bf16.mxu0 0
        %1690 = vmatmul.mubr.bf16.gmra.mxu0 %v1006
        %v1691 = vpop.f32.mrf.mxu0
        %v1692 = vadd.f32 0.0, %v1691
        %v1693 = vpop.f32.mrf.mxu0
        %v1694 = vpop.f32.mrf.mxu0
        %v1695 = vadd.f32 0.0, %v1694
        %v1696 = vpop.f32.mrf.mxu0
        %1697 = vmatprep.mubr.bf16.mxu0 0
        %1698 = vmatmul.mubr.bf16.gmra.mxu0 %v1009
        %v1699 = vpop.f32.mrf.mxu0
        %v1700 = vadd.f32 0.0, %v1699
        %v1701 = vpop.f32.mrf.mxu0
        %v1702 = vpop.f32.mrf.mxu0
        %v1703 = vadd.f32 0.0, %v1702
        %v1704 = vpop.f32.mrf.mxu0
        %1705 = vmatprep.mubr.bf16.mxu0 0
        %1706 = vmatmul.mubr.bf16.gmra.mxu0 %v1012
        %v1707 = vpop.f32.mrf.mxu0
        %v1708 = vadd.f32 0.0, %v1707
        %v1709 = vpop.f32.mrf.mxu0
        %v1710 = vpop.f32.mrf.mxu0
        %v1711 = vadd.f32 0.0, %v1710
        %v1712 = vpop.f32.mrf.mxu0
        %1713 = vmatprep.mubr.bf16.mxu0 0
        %1714 = vmatmul.mubr.bf16.gmra.mxu0 %v1015
        %v1715 = vpop.f32.mrf.mxu0
        %v1716 = vadd.f32 0.0, %v1715
        %v1717 = vpop.f32.mrf.mxu0
        %v1718 = vpop.f32.mrf.mxu0
        %v1719 = vadd.f32 0.0, %v1718
        %v1720 = vpop.f32.mrf.mxu0
        %1721 = vmatprep.mubr.bf16.mxu0 0
        %1722 = vmatmul.mubr.bf16.gmra.mxu0 %v1018
        %v1723 = vpop.f32.mrf.mxu0
        %v1724 = vadd.f32 0.0, %v1723
        %v1725 = vpop.f32.mrf.mxu0
        %v1726 = vpop.f32.mrf.mxu0
        %v1727 = vadd.f32 0.0, %v1726
        %v1728 = vpop.f32.mrf.mxu0
        %1729 = vmatprep.mubr.bf16.mxu0 0
        %1730 = vmatmul.mubr.bf16.gmra.mxu0 %v1021
        %v1731 = vpop.f32.mrf.mxu0
        %v1732 = vadd.f32 0.0, %v1731
        %v1733 = vpop.f32.mrf.mxu0
        %v1734 = vpop.f32.mrf.mxu0
        %v1735 = vadd.f32 0.0, %v1734
        %v1736 = vpop.f32.mrf.mxu0
        %1737 = vmatprep.mubr.bf16.mxu0 0
        %1738 = vmatmul.mubr.bf16.gmra.mxu0 %v1024
        %v1739 = vpop.f32.mrf.mxu0
        %v1740 = vadd.f32 0.0, %v1739
        %v1741 = vpop.f32.mrf.mxu0
        %v1742 = vpop.f32.mrf.mxu0
        %v1743 = vadd.f32 0.0, %v1742
        %v1744 = vpop.f32.mrf.mxu0
        %1745 = vmatprep.mubr.bf16.mxu0 0
        %1746 = vmatmul.mubr.bf16.gmra.mxu0 %v1027
        %v1747 = vpop.f32.mrf.mxu0
        %v1748 = vadd.f32 0.0, %v1747
        %v1749 = vpop.f32.mrf.mxu0
        %v1750 = vpop.f32.mrf.mxu0
        %v1751 = vadd.f32 0.0, %v1750
        %v1752 = vpop.f32.mrf.mxu0
        %1753 = vmatprep.mubr.bf16.mxu0 0
        %1754 = vmatmul.mubr.bf16.gmra.mxu0 %v1030
        %v1755 = vpop.f32.mrf.mxu0
        %v1756 = vadd.f32 0.0, %v1755
        %v1757 = vpop.f32.mrf.mxu0
        %v1758 = vpop.f32.mrf.mxu0
        %v1759 = vadd.f32 0.0, %v1758
        %v1760 = vpop.f32.mrf.mxu0
        %1761 = vmatprep.mubr.bf16.mxu0 0
        %1762 = vmatmul.mubr.bf16.gmra.mxu0 %v1033
        %v1763 = vpop.f32.mrf.mxu0
        %v1764 = vadd.f32 0.0, %v1763
        %v1765 = vpop.f32.mrf.mxu0
        %v1766 = vpop.f32.mrf.mxu0
        %v1767 = vadd.f32 0.0, %v1766
        %v1768 = vpop.f32.mrf.mxu0
        %1769 = vmatprep.mubr.bf16.mxu0 0
        %1770 = vmatmul.mubr.bf16.gmra.mxu0 %v1036
        %v1771 = vpop.f32.mrf.mxu0
        %v1772 = vadd.f32 0.0, %v1771
        %v1773 = vpop.f32.mrf.mxu0
        %v1774 = vpop.f32.mrf.mxu0
        %v1775 = vadd.f32 0.0, %v1774
        %v1776 = vpop.f32.mrf.mxu0
        %1777 = vmatprep.mubr.bf16.mxu0 0
        %1778 = vmatmul.mubr.bf16.gmra.mxu0 %v1039
        %v1779 = vpop.f32.mrf.mxu0
        %v1780 = vadd.f32 0.0, %v1779
        %v1781 = vpop.f32.mrf.mxu0
        %v1782 = vpop.f32.mrf.mxu0
        %v1783 = vadd.f32 0.0, %v1782
        %v1784 = vpop.f32.mrf.mxu0
        %1785 = vmatprep.mubr.bf16.mxu0 0
        %1786 = vmatmul.mubr.bf16.gmra.mxu0 %v1042
        %v1787 = vpop.f32.mrf.mxu0
        %v1788 = vadd.f32 0.0, %v1787
        %v1789 = vpop.f32.mrf.mxu0
        %v1790 = vpop.f32.mrf.mxu0
        %v1791 = vadd.f32 0.0, %v1790
        %v1792 = vpop.f32.mrf.mxu0
        %1793 = vmatprep.mubr.bf16.mxu0 0
        %1794 = vmatmul.mubr.bf16.gmra.mxu0 %v1045
        %v1795 = vpop.f32.mrf.mxu0
        %v1796 = vadd.f32 0.0, %v1795
        %v1797 = vpop.f32.mrf.mxu0
        %v1798 = vpop.f32.mrf.mxu0
        %v1799 = vadd.f32 0.0, %v1798
        %v1800 = vpop.f32.mrf.mxu0
        %1801 = vmatprep.mubr.bf16.mxu0 0
        %1802 = vmatmul.mubr.bf16.gmra.mxu0 %v1644
        %v1803 = vpop.f32.mrf.mxu0
        %v1804 = vadd.f32 0.0, %v1803
        %v1805 = vpop.f32.mrf.mxu0
        %v1806 = vpop.f32.mrf.mxu0
        %v1807 = vadd.f32 0.0, %v1806
        %v1808 = vpop.f32.mrf.mxu0
        %1809 = vdwg.mxu0
        %v1810 = vadd.f32 %v1604, %v1684
        %v1811 = vadd.f32 %v1605, %v1687
        %v1812 = vadd.f32 %v1606, %v1692
        %v1813 = vadd.f32 %v1607, %v1695
        %v1814 = vadd.f32 %v1608, %v1700
        %v1815 = vadd.f32 %v1609, %v1703
        %v1816 = vadd.f32 %v1610, %v1708
        %v1817 = vadd.f32 %v1611, %v1711
        %v1818 = vadd.f32 %v1612, %v1716
        %v1819 = vadd.f32 %v1613, %v1719
        %v1820 = vadd.f32 %v1614, %v1724
        %v1821 = vadd.f32 %v1615, %v1727
        %v1822 = vadd.f32 %v1616, %v1732
        %v1823 = vadd.f32 %v1617, %v1735
        %v1824 = vadd.f32 %v1618, %v1740
        %v1825 = vadd.f32 %v1619, %v1743
        %v1826 = vadd.f32 %v1620, %v1748
        %v1827 = vadd.f32 %v1621, %v1751
        %v1828 = vadd.f32 %v1622, %v1756
        %v1829 = vadd.f32 %v1623, %v1759
        %v1830 = vadd.f32 %v1624, %v1764
        %v1831 = vadd.f32 %v1625, %v1767
        %v1832 = vadd.f32 %v1626, %v1772
        %v1833 = vadd.f32 %v1627, %v1775
        %v1834 = vadd.f32 %v1628, %v1780
        %v1835 = vadd.f32 %v1629, %v1783
        %v1836 = vadd.f32 %v1630, %v1788
        %v1837 = vadd.f32 %v1631, %v1791
        %v1838 = vadd.f32 %v1632, %v1796
        %v1839 = vadd.f32 %v1633, %v1799
        %v1840 = vadd.f32 %v1634, %v1804
        %v1841 = vadd.f32 %v1635, %v1807
        %v1843 = vshrl.u32 %v261, 16
        %v1845 = vrot.slane %v1843, 4
        %v1846 = vshll.u32 %v261, 16
        %v1848 = vrot.slane %v1846, 5
        %v1849 = vor.u32 %v1845, %v1848
        %v1850 = vrot.slane %v1849, 4
        %v1852 = vshll.u32 %v262, 16
        %v1854 = vrot.slane %v1852, 5
        %v1855 = vsel %vm270, %v1850, %v1854
        %v1856 = vshrl.u32 %v262, 16
        %v1858 = vrot.slane %v1856, 4
        %v1859 = vor.u32 %v1858, %v1854
        %v1860 = vrot.slane %v1859, 4
        %v1862 = vshll.u32 %v263, 16
        %v1864 = vrot.slane %v1862, 5
        %v1865 = vsel %vm270, %v1860, %v1864
        %s1866 = scalar_lea.vmem %s1, 16
        %v1867 = vld [vmem:[%s1866] sm:$0xf]
        %v1868 = vunpack.c.l.b16 %v1855
        %v1869 = vunpack.c.l.b16 %v1865
        %v1870 = vpack.c.b16 %v1869, %v1868
        %v1872 = vsel %vm705, %v1870, 0
        %v1875 = vsel %vm754, %v1867, 0
        %1877 = vmatprep.subr.bf16.mxu0 0
        %1878 = vmatpush1.bf16.msra.mxu0 0
        %1879 = vmatprep.subr.bf16.mxu0 0
        %1880 = vmatpush1.bf16.msra.mxu0 0
        %1881 = vmatprep.subr.bf16.mxu0 0
        %1882 = vmatpush1.bf16.msra.mxu0 0
        %1883 = vmatprep.subr.bf16.mxu0 0
        %1884 = vmatpush1.bf16.msra.mxu0 0
        %1885 = vmatprep.subr.bf16.mxu0 0
        %1886 = vmatpush1.bf16.msra.mxu0 0
        %1887 = vmatprep.subr.bf16.mxu0 0
        %1888 = vmatpush1.bf16.msra.mxu0 0
        %1889 = vmatprep.subr.bf16.mxu0 0
        %1890 = vmatpush1.bf16.msra.mxu0 0
        %1891 = vmatprep.subr.bf16.mxu0 0
        %1892 = vmatpush1.bf16.msra.mxu0 %v1875
        %1893 = vmatprep.subr.bf16.mxu0 0
        %1894 = vmatpush2.bf16.msra.mxu0 0
        %1895 = vmatprep.subr.bf16.mxu0 0
        %1896 = vmatpush2.bf16.msra.mxu0 0
        %1897 = vmatprep.subr.bf16.mxu0 0
        %1898 = vmatpush2.bf16.msra.mxu0 0
        %1899 = vmatprep.subr.bf16.mxu0 0
        %1900 = vmatpush2.bf16.msra.mxu0 0
        %1901 = vmatprep.subr.bf16.mxu0 0
        %1902 = vmatpush2.bf16.msra.mxu0 0
        %1903 = vmatprep.subr.bf16.mxu0 0
        %1904 = vmatpush2.bf16.msra.mxu0 0
        %1905 = vmatprep.subr.bf16.mxu0 0
        %1906 = vmatpush2.bf16.msra.mxu0 0
        %1907 = vmatprep.subr.bf16.mxu0 0
        %1908 = vmatpush2.bf16.msra.mxu0 0
        %1909 = vmatprep.mubr.bf16.mxu0 0
        %1910 = vmatmul.mubr.bf16.gmra.mxu0 %v710
        %v1911 = vpop.f32.mrf.mxu0
        %v1912 = vadd.f32 0.0, %v1911
        %v1913 = vpop.f32.mrf.mxu0
        %v1914 = vpop.f32.mrf.mxu0
        %v1915 = vadd.f32 0.0, %v1914
        %v1916 = vpop.f32.mrf.mxu0
        %1917 = vmatprep.mubr.bf16.mxu0 0
        %1918 = vmatmul.mubr.bf16.gmra.mxu0 %v713
        %v1919 = vpop.f32.mrf.mxu0
        %v1920 = vadd.f32 0.0, %v1919
        %v1921 = vpop.f32.mrf.mxu0
        %v1922 = vpop.f32.mrf.mxu0
        %v1923 = vadd.f32 0.0, %v1922
        %v1924 = vpop.f32.mrf.mxu0
        %1925 = vmatprep.mubr.bf16.mxu0 0
        %1926 = vmatmul.mubr.bf16.gmra.mxu0 %v716
        %v1927 = vpop.f32.mrf.mxu0
        %v1928 = vadd.f32 0.0, %v1927
        %v1929 = vpop.f32.mrf.mxu0
        %v1930 = vpop.f32.mrf.mxu0
        %v1931 = vadd.f32 0.0, %v1930
        %v1932 = vpop.f32.mrf.mxu0
        %1933 = vmatprep.mubr.bf16.mxu0 0
        %1934 = vmatmul.mubr.bf16.gmra.mxu0 %v719
        %v1935 = vpop.f32.mrf.mxu0
        %v1936 = vadd.f32 0.0, %v1935
        %v1937 = vpop.f32.mrf.mxu0
        %v1938 = vpop.f32.mrf.mxu0
        %v1939 = vadd.f32 0.0, %v1938
        %v1940 = vpop.f32.mrf.mxu0
        %1941 = vmatprep.mubr.bf16.mxu0 0
        %1942 = vmatmul.mubr.bf16.gmra.mxu0 %v722
        %v1943 = vpop.f32.mrf.mxu0
        %v1944 = vadd.f32 0.0, %v1943
        %v1945 = vpop.f32.mrf.mxu0
        %v1946 = vpop.f32.mrf.mxu0
        %v1947 = vadd.f32 0.0, %v1946
        %v1948 = vpop.f32.mrf.mxu0
        %1949 = vmatprep.mubr.bf16.mxu0 0
        %1950 = vmatmul.mubr.bf16.gmra.mxu0 %v725
        %v1951 = vpop.f32.mrf.mxu0
        %v1952 = vadd.f32 0.0, %v1951
        %v1953 = vpop.f32.mrf.mxu0
        %v1954 = vpop.f32.mrf.mxu0
        %v1955 = vadd.f32 0.0, %v1954
        %v1956 = vpop.f32.mrf.mxu0
        %1957 = vmatprep.mubr.bf16.mxu0 0
        %1958 = vmatmul.mubr.bf16.gmra.mxu0 %v728
        %v1959 = vpop.f32.mrf.mxu0
        %v1960 = vadd.f32 0.0, %v1959
        %v1961 = vpop.f32.mrf.mxu0
        %v1962 = vpop.f32.mrf.mxu0
        %v1963 = vadd.f32 0.0, %v1962
        %v1964 = vpop.f32.mrf.mxu0
        %1965 = vmatprep.mubr.bf16.mxu0 0
        %1966 = vmatmul.mubr.bf16.gmra.mxu0 %v731
        %v1967 = vpop.f32.mrf.mxu0
        %v1968 = vadd.f32 0.0, %v1967
        %v1969 = vpop.f32.mrf.mxu0
        %v1970 = vpop.f32.mrf.mxu0
        %v1971 = vadd.f32 0.0, %v1970
        %v1972 = vpop.f32.mrf.mxu0
        %1973 = vmatprep.mubr.bf16.mxu0 0
        %1974 = vmatmul.mubr.bf16.gmra.mxu0 %v734
        %v1975 = vpop.f32.mrf.mxu0
        %v1976 = vadd.f32 0.0, %v1975
        %v1977 = vpop.f32.mrf.mxu0
        %v1978 = vpop.f32.mrf.mxu0
        %v1979 = vadd.f32 0.0, %v1978
        %v1980 = vpop.f32.mrf.mxu0
        %1981 = vmatprep.mubr.bf16.mxu0 0
        %1982 = vmatmul.mubr.bf16.gmra.mxu0 %v737
        %v1983 = vpop.f32.mrf.mxu0
        %v1984 = vadd.f32 0.0, %v1983
        %v1985 = vpop.f32.mrf.mxu0
        %v1986 = vpop.f32.mrf.mxu0
        %v1987 = vadd.f32 0.0, %v1986
        %v1988 = vpop.f32.mrf.mxu0
        %1989 = vmatprep.mubr.bf16.mxu0 0
        %1990 = vmatmul.mubr.bf16.gmra.mxu0 %v740
        %v1991 = vpop.f32.mrf.mxu0
        %v1992 = vadd.f32 0.0, %v1991
        %v1993 = vpop.f32.mrf.mxu0
        %v1994 = vpop.f32.mrf.mxu0
        %v1995 = vadd.f32 0.0, %v1994
        %v1996 = vpop.f32.mrf.mxu0
        %1997 = vmatprep.mubr.bf16.mxu0 0
        %1998 = vmatmul.mubr.bf16.gmra.mxu0 %v743
        %v1999 = vpop.f32.mrf.mxu0
        %v2000 = vadd.f32 0.0, %v1999
        %v2001 = vpop.f32.mrf.mxu0
        %v2002 = vpop.f32.mrf.mxu0
        %v2003 = vadd.f32 0.0, %v2002
        %v2004 = vpop.f32.mrf.mxu0
        %2005 = vmatprep.mubr.bf16.mxu0 0
        %2006 = vmatmul.mubr.bf16.gmra.mxu0 %v746
        %v2007 = vpop.f32.mrf.mxu0
        %v2008 = vadd.f32 0.0, %v2007
        %v2009 = vpop.f32.mrf.mxu0
        %v2010 = vpop.f32.mrf.mxu0
        %v2011 = vadd.f32 0.0, %v2010
        %v2012 = vpop.f32.mrf.mxu0
        %2013 = vmatprep.mubr.bf16.mxu0 0
        %2014 = vmatmul.mubr.bf16.gmra.mxu0 %v749
        %v2015 = vpop.f32.mrf.mxu0
        %v2016 = vadd.f32 0.0, %v2015
        %v2017 = vpop.f32.mrf.mxu0
        %v2018 = vpop.f32.mrf.mxu0
        %v2019 = vadd.f32 0.0, %v2018
        %v2020 = vpop.f32.mrf.mxu0
        %2021 = vmatprep.mubr.bf16.mxu0 0
        %2022 = vmatmul.mubr.bf16.gmra.mxu0 %v752
        %v2023 = vpop.f32.mrf.mxu0
        %v2024 = vadd.f32 0.0, %v2023
        %v2025 = vpop.f32.mrf.mxu0
        %v2026 = vpop.f32.mrf.mxu0
        %v2027 = vadd.f32 0.0, %v2026
        %v2028 = vpop.f32.mrf.mxu0
        %2029 = vmatprep.mubr.bf16.mxu0 0
        %2030 = vmatmul.mubr.bf16.gmra.mxu0 %v1872
        %v2031 = vpop.f32.mrf.mxu0
        %v2032 = vadd.f32 0.0, %v2031
        %v2033 = vpop.f32.mrf.mxu0
        %v2034 = vpop.f32.mrf.mxu0
        %v2035 = vadd.f32 0.0, %v2034
        %v2036 = vpop.f32.mrf.mxu0
        %2037 = vdwg.mxu0
        %v2038 = vadd.f32 %v1810, %v1912
        %v2039 = vadd.f32 %v1811, %v1915
        %v2040 = vadd.f32 %v1812, %v1920
        %v2041 = vadd.f32 %v1813, %v1923
        %v2042 = vadd.f32 %v1814, %v1928
        %v2043 = vadd.f32 %v1815, %v1931
        %v2044 = vadd.f32 %v1816, %v1936
        %v2045 = vadd.f32 %v1817, %v1939
        %v2046 = vadd.f32 %v1818, %v1944
        %v2047 = vadd.f32 %v1819, %v1947
        %v2048 = vadd.f32 %v1820, %v1952
        %v2049 = vadd.f32 %v1821, %v1955
        %v2050 = vadd.f32 %v1822, %v1960
        %v2051 = vadd.f32 %v1823, %v1963
        %v2052 = vadd.f32 %v1824, %v1968
        %v2053 = vadd.f32 %v1825, %v1971
        %v2054 = vadd.f32 %v1826, %v1976
        %v2055 = vadd.f32 %v1827, %v1979
        %v2056 = vadd.f32 %v1828, %v1984
        %v2057 = vadd.f32 %v1829, %v1987
        %v2058 = vadd.f32 %v1830, %v1992
        %v2059 = vadd.f32 %v1831, %v1995
        %v2060 = vadd.f32 %v1832, %v2000
        %v2061 = vadd.f32 %v1833, %v2003
        %v2062 = vadd.f32 %v1834, %v2008
        %v2063 = vadd.f32 %v1835, %v2011
        %v2064 = vadd.f32 %v1836, %v2016
        %v2065 = vadd.f32 %v1837, %v2019
        %v2066 = vadd.f32 %v1838, %v2024
        %v2067 = vadd.f32 %v1839, %v2027
        %v2068 = vadd.f32 %v1840, %v2032
        %v2069 = vadd.f32 %v1841, %v2035
        %v2071 = vrot.slane %v261, 5
        %v2072 = vrot.slane %v2071, 4
        %v2073 = vrot.slane %v262, 5
        %v2074 = vsel %vm1229, %v2072, %v2073
        %v2075 = vrot.slane %v2073, 4
        %v2076 = vrot.slane %v263, 5
        %v2077 = vsel %vm1229, %v2075, %v2076
        %s2078 = scalar_lea.vmem %s1, 20
        %v2079 = vld [vmem:[%s2078] sm:$0xf]
        %v2080 = vunpack.c.l.b16 %v2074
        %v2081 = vunpack.c.l.b16 %v2077
        %v2082 = vpack.c.b16 %v2081, %v2080
        %v2084 = vsel %vm705, %v2082, 0
        %v2087 = vsel %vm754, %v2079, 0
        %2089 = vmatprep.subr.bf16.mxu0 0
        %2090 = vmatpush1.bf16.msra.mxu0 0
        %2091 = vmatprep.subr.bf16.mxu0 0
        %2092 = vmatpush1.bf16.msra.mxu0 0
        %2093 = vmatprep.subr.bf16.mxu0 0
        %2094 = vmatpush1.bf16.msra.mxu0 0
        %2095 = vmatprep.subr.bf16.mxu0 0
        %2096 = vmatpush1.bf16.msra.mxu0 0
        %2097 = vmatprep.subr.bf16.mxu0 0
        %2098 = vmatpush1.bf16.msra.mxu0 0
        %2099 = vmatprep.subr.bf16.mxu0 0
        %2100 = vmatpush1.bf16.msra.mxu0 0
        %2101 = vmatprep.subr.bf16.mxu0 0
        %2102 = vmatpush1.bf16.msra.mxu0 0
        %2103 = vmatprep.subr.bf16.mxu0 0
        %2104 = vmatpush1.bf16.msra.mxu0 %v2087
        %2105 = vmatprep.subr.bf16.mxu0 0
        %2106 = vmatpush2.bf16.msra.mxu0 0
        %2107 = vmatprep.subr.bf16.mxu0 0
        %2108 = vmatpush2.bf16.msra.mxu0 0
        %2109 = vmatprep.subr.bf16.mxu0 0
        %2110 = vmatpush2.bf16.msra.mxu0 0
        %2111 = vmatprep.subr.bf16.mxu0 0
        %2112 = vmatpush2.bf16.msra.mxu0 0
        %2113 = vmatprep.subr.bf16.mxu0 0
        %2114 = vmatpush2.bf16.msra.mxu0 0
        %2115 = vmatprep.subr.bf16.mxu0 0
        %2116 = vmatpush2.bf16.msra.mxu0 0
        %2117 = vmatprep.subr.bf16.mxu0 0
        %2118 = vmatpush2.bf16.msra.mxu0 0
        %2119 = vmatprep.subr.bf16.mxu0 0
        %2120 = vmatpush2.bf16.msra.mxu0 0
        %2121 = vmatprep.mubr.bf16.mxu0 0
        %2122 = vmatmul.mubr.bf16.gmra.mxu0 %v1396
        %v2123 = vpop.f32.mrf.mxu0
        %v2124 = vadd.f32 0.0, %v2123
        %v2125 = vpop.f32.mrf.mxu0
        %v2126 = vpop.f32.mrf.mxu0
        %v2127 = vadd.f32 0.0, %v2126
        %v2128 = vpop.f32.mrf.mxu0
        %2129 = vmatprep.mubr.bf16.mxu0 0
        %2130 = vmatmul.mubr.bf16.gmra.mxu0 %v1399
        %v2131 = vpop.f32.mrf.mxu0
        %v2132 = vadd.f32 0.0, %v2131
        %v2133 = vpop.f32.mrf.mxu0
        %v2134 = vpop.f32.mrf.mxu0
        %v2135 = vadd.f32 0.0, %v2134
        %v2136 = vpop.f32.mrf.mxu0
        %2137 = vmatprep.mubr.bf16.mxu0 0
        %2138 = vmatmul.mubr.bf16.gmra.mxu0 %v1402
        %v2139 = vpop.f32.mrf.mxu0
        %v2140 = vadd.f32 0.0, %v2139
        %v2141 = vpop.f32.mrf.mxu0
        %v2142 = vpop.f32.mrf.mxu0
        %v2143 = vadd.f32 0.0, %v2142
        %v2144 = vpop.f32.mrf.mxu0
        %2145 = vmatprep.mubr.bf16.mxu0 0
        %2146 = vmatmul.mubr.bf16.gmra.mxu0 %v1405
        %v2147 = vpop.f32.mrf.mxu0
        %v2148 = vadd.f32 0.0, %v2147
        %v2149 = vpop.f32.mrf.mxu0
        %v2150 = vpop.f32.mrf.mxu0
        %v2151 = vadd.f32 0.0, %v2150
        %v2152 = vpop.f32.mrf.mxu0
        %2153 = vmatprep.mubr.bf16.mxu0 0
        %2154 = vmatmul.mubr.bf16.gmra.mxu0 %v1408
        %v2155 = vpop.f32.mrf.mxu0
        %v2156 = vadd.f32 0.0, %v2155
        %v2157 = vpop.f32.mrf.mxu0
        %v2158 = vpop.f32.mrf.mxu0
        %v2159 = vadd.f32 0.0, %v2158
        %v2160 = vpop.f32.mrf.mxu0
        %2161 = vmatprep.mubr.bf16.mxu0 0
        %2162 = vmatmul.mubr.bf16.gmra.mxu0 %v1411
        %v2163 = vpop.f32.mrf.mxu0
        %v2164 = vadd.f32 0.0, %v2163
        %v2165 = vpop.f32.mrf.mxu0
        %v2166 = vpop.f32.mrf.mxu0
        %v2167 = vadd.f32 0.0, %v2166
        %v2168 = vpop.f32.mrf.mxu0
        %2169 = vmatprep.mubr.bf16.mxu0 0
        %2170 = vmatmul.mubr.bf16.gmra.mxu0 %v1414
        %v2171 = vpop.f32.mrf.mxu0
        %v2172 = vadd.f32 0.0, %v2171
        %v2173 = vpop.f32.mrf.mxu0
        %v2174 = vpop.f32.mrf.mxu0
        %v2175 = vadd.f32 0.0, %v2174
        %v2176 = vpop.f32.mrf.mxu0
        %2177 = vmatprep.mubr.bf16.mxu0 0
        %2178 = vmatmul.mubr.bf16.gmra.mxu0 %v1417
        %v2179 = vpop.f32.mrf.mxu0
        %v2180 = vadd.f32 0.0, %v2179
        %v2181 = vpop.f32.mrf.mxu0
        %v2182 = vpop.f32.mrf.mxu0
        %v2183 = vadd.f32 0.0, %v2182
        %v2184 = vpop.f32.mrf.mxu0
        %2185 = vmatprep.mubr.bf16.mxu0 0
        %2186 = vmatmul.mubr.bf16.gmra.mxu0 %v1420
        %v2187 = vpop.f32.mrf.mxu0
        %v2188 = vadd.f32 0.0, %v2187
        %v2189 = vpop.f32.mrf.mxu0
        %v2190 = vpop.f32.mrf.mxu0
        %v2191 = vadd.f32 0.0, %v2190
        %v2192 = vpop.f32.mrf.mxu0
        %2193 = vmatprep.mubr.bf16.mxu0 0
        %2194 = vmatmul.mubr.bf16.gmra.mxu0 %v1423
        %v2195 = vpop.f32.mrf.mxu0
        %v2196 = vadd.f32 0.0, %v2195
        %v2197 = vpop.f32.mrf.mxu0
        %v2198 = vpop.f32.mrf.mxu0
        %v2199 = vadd.f32 0.0, %v2198
        %v2200 = vpop.f32.mrf.mxu0
        %2201 = vmatprep.mubr.bf16.mxu0 0
        %2202 = vmatmul.mubr.bf16.gmra.mxu0 %v1426
        %v2203 = vpop.f32.mrf.mxu0
        %v2204 = vadd.f32 0.0, %v2203
        %v2205 = vpop.f32.mrf.mxu0
        %v2206 = vpop.f32.mrf.mxu0
        %v2207 = vadd.f32 0.0, %v2206
        %v2208 = vpop.f32.mrf.mxu0
        %2209 = vmatprep.mubr.bf16.mxu0 0
        %2210 = vmatmul.mubr.bf16.gmra.mxu0 %v1429
        %v2211 = vpop.f32.mrf.mxu0
        %v2212 = vadd.f32 0.0, %v2211
        %v2213 = vpop.f32.mrf.mxu0
        %v2214 = vpop.f32.mrf.mxu0
        %v2215 = vadd.f32 0.0, %v2214
        %v2216 = vpop.f32.mrf.mxu0
        %2217 = vmatprep.mubr.bf16.mxu0 0
        %2218 = vmatmul.mubr.bf16.gmra.mxu0 %v1432
        %v2219 = vpop.f32.mrf.mxu0
        %v2220 = vadd.f32 0.0, %v2219
        %v2221 = vpop.f32.mrf.mxu0
        %v2222 = vpop.f32.mrf.mxu0
        %v2223 = vadd.f32 0.0, %v2222
        %v2224 = vpop.f32.mrf.mxu0
        %2225 = vmatprep.mubr.bf16.mxu0 0
        %2226 = vmatmul.mubr.bf16.gmra.mxu0 %v1435
        %v2227 = vpop.f32.mrf.mxu0
        %v2228 = vadd.f32 0.0, %v2227
        %v2229 = vpop.f32.mrf.mxu0
        %v2230 = vpop.f32.mrf.mxu0
        %v2231 = vadd.f32 0.0, %v2230
        %v2232 = vpop.f32.mrf.mxu0
        %2233 = vmatprep.mubr.bf16.mxu0 0
        %2234 = vmatmul.mubr.bf16.gmra.mxu0 %v1438
        %v2235 = vpop.f32.mrf.mxu0
        %v2236 = vadd.f32 0.0, %v2235
        %v2237 = vpop.f32.mrf.mxu0
        %v2238 = vpop.f32.mrf.mxu0
        %v2239 = vadd.f32 0.0, %v2238
        %v2240 = vpop.f32.mrf.mxu0
        %2241 = vmatprep.mubr.bf16.mxu0 0
        %2242 = vmatmul.mubr.bf16.gmra.mxu0 %v2084
        %v2243 = vpop.f32.mrf.mxu0
        %v2244 = vadd.f32 0.0, %v2243
        %v2245 = vpop.f32.mrf.mxu0
        %v2246 = vpop.f32.mrf.mxu0
        %v2247 = vadd.f32 0.0, %v2246
        %v2248 = vpop.f32.mrf.mxu0
        %2249 = vdwg.mxu0
        %v2250 = vadd.f32 %v2038, %v2124
        %v2251 = vadd.f32 %v2039, %v2127
        %v2252 = vadd.f32 %v2040, %v2132
        %v2253 = vadd.f32 %v2041, %v2135
        %v2254 = vadd.f32 %v2042, %v2140
        %v2255 = vadd.f32 %v2043, %v2143
        %v2256 = vadd.f32 %v2044, %v2148
        %v2257 = vadd.f32 %v2045, %v2151
        %v2258 = vadd.f32 %v2046, %v2156
        %v2259 = vadd.f32 %v2047, %v2159
        %v2260 = vadd.f32 %v2048, %v2164
        %v2261 = vadd.f32 %v2049, %v2167
        %v2262 = vadd.f32 %v2050, %v2172
        %v2263 = vadd.f32 %v2051, %v2175
        %v2264 = vadd.f32 %v2052, %v2180
        %v2265 = vadd.f32 %v2053, %v2183
        %v2266 = vadd.f32 %v2054, %v2188
        %v2267 = vadd.f32 %v2055, %v2191
        %v2268 = vadd.f32 %v2056, %v2196
        %v2269 = vadd.f32 %v2057, %v2199
        %v2270 = vadd.f32 %v2058, %v2204
        %v2271 = vadd.f32 %v2059, %v2207
        %v2272 = vadd.f32 %v2060, %v2212
        %v2273 = vadd.f32 %v2061, %v2215
        %v2274 = vadd.f32 %v2062, %v2220
        %v2275 = vadd.f32 %v2063, %v2223
        %v2276 = vadd.f32 %v2064, %v2228
        %v2277 = vadd.f32 %v2065, %v2231
        %v2278 = vadd.f32 %v2066, %v2236
        %v2279 = vadd.f32 %v2067, %v2239
        %v2280 = vadd.f32 %v2068, %v2244
        %v2281 = vadd.f32 %v2069, %v2247
        %s2282 = scalar_lea.vmem %s1, 24
        %v2283 = vld [vmem:[%s2282] sm:$0xf]
        %v2286 = vunpack.c.l.b16 %v264
        %v2287 = vunpack.c.l.b16 %v265
        %v2288 = vpack.c.b16 %v2287, %v2286
        %v2290 = vsel %vm705, %v2288, 0
        %v2293 = vsel %vm754, %v2283, 0
        %2295 = vmatprep.subr.bf16.mxu0 0
        %2296 = vmatpush1.bf16.msra.mxu0 0
        %2297 = vmatprep.subr.bf16.mxu0 0
        %2298 = vmatpush1.bf16.msra.mxu0 0
        %2299 = vmatprep.subr.bf16.mxu0 0
        %2300 = vmatpush1.bf16.msra.mxu0 0
        %2301 = vmatprep.subr.bf16.mxu0 0
        %2302 = vmatpush1.bf16.msra.mxu0 0
        %2303 = vmatprep.subr.bf16.mxu0 0
        %2304 = vmatpush1.bf16.msra.mxu0 0
        %2305 = vmatprep.subr.bf16.mxu0 0
        %2306 = vmatpush1.bf16.msra.mxu0 0
        %2307 = vmatprep.subr.bf16.mxu0 0
        %2308 = vmatpush1.bf16.msra.mxu0 0
        %2309 = vmatprep.subr.bf16.mxu0 0
        %2310 = vmatpush1.bf16.msra.mxu0 %v2293
        %2311 = vmatprep.subr.bf16.mxu0 0
        %2312 = vmatpush2.bf16.msra.mxu0 0
        %2313 = vmatprep.subr.bf16.mxu0 0
        %2314 = vmatpush2.bf16.msra.mxu0 0
        %2315 = vmatprep.subr.bf16.mxu0 0
        %2316 = vmatpush2.bf16.msra.mxu0 0
        %2317 = vmatprep.subr.bf16.mxu0 0
        %2318 = vmatpush2.bf16.msra.mxu0 0
        %2319 = vmatprep.subr.bf16.mxu0 0
        %2320 = vmatpush2.bf16.msra.mxu0 0
        %2321 = vmatprep.subr.bf16.mxu0 0
        %2322 = vmatpush2.bf16.msra.mxu0 0
        %2323 = vmatprep.subr.bf16.mxu0 0
        %2324 = vmatpush2.bf16.msra.mxu0 0
        %2325 = vmatprep.subr.bf16.mxu0 0
        %2326 = vmatpush2.bf16.msra.mxu0 0
        %2327 = vmatprep.mubr.bf16.mxu0 0
        %2328 = vmatmul.mubr.bf16.gmra.mxu0 %v1006
        %v2329 = vpop.f32.mrf.mxu0
        %v2330 = vadd.f32 0.0, %v2329
        %v2331 = vpop.f32.mrf.mxu0
        %v2332 = vpop.f32.mrf.mxu0
        %v2333 = vadd.f32 0.0, %v2332
        %v2334 = vpop.f32.mrf.mxu0
        %2335 = vmatprep.mubr.bf16.mxu0 0
        %2336 = vmatmul.mubr.bf16.gmra.mxu0 %v1009
        %v2337 = vpop.f32.mrf.mxu0
        %v2338 = vadd.f32 0.0, %v2337
        %v2339 = vpop.f32.mrf.mxu0
        %v2340 = vpop.f32.mrf.mxu0
        %v2341 = vadd.f32 0.0, %v2340
        %v2342 = vpop.f32.mrf.mxu0
        %2343 = vmatprep.mubr.bf16.mxu0 0
        %2344 = vmatmul.mubr.bf16.gmra.mxu0 %v1012
        %v2345 = vpop.f32.mrf.mxu0
        %v2346 = vadd.f32 0.0, %v2345
        %v2347 = vpop.f32.mrf.mxu0
        %v2348 = vpop.f32.mrf.mxu0
        %v2349 = vadd.f32 0.0, %v2348
        %v2350 = vpop.f32.mrf.mxu0
        %2351 = vmatprep.mubr.bf16.mxu0 0
        %2352 = vmatmul.mubr.bf16.gmra.mxu0 %v1015
        %v2353 = vpop.f32.mrf.mxu0
        %v2354 = vadd.f32 0.0, %v2353
        %v2355 = vpop.f32.mrf.mxu0
        %v2356 = vpop.f32.mrf.mxu0
        %v2357 = vadd.f32 0.0, %v2356
        %v2358 = vpop.f32.mrf.mxu0
        %2359 = vmatprep.mubr.bf16.mxu0 0
        %2360 = vmatmul.mubr.bf16.gmra.mxu0 %v1018
        %v2361 = vpop.f32.mrf.mxu0
        %v2362 = vadd.f32 0.0, %v2361
        %v2363 = vpop.f32.mrf.mxu0
        %v2364 = vpop.f32.mrf.mxu0
        %v2365 = vadd.f32 0.0, %v2364
        %v2366 = vpop.f32.mrf.mxu0
        %2367 = vmatprep.mubr.bf16.mxu0 0
        %2368 = vmatmul.mubr.bf16.gmra.mxu0 %v1021
        %v2369 = vpop.f32.mrf.mxu0
        %v2370 = vadd.f32 0.0, %v2369
        %v2371 = vpop.f32.mrf.mxu0
        %v2372 = vpop.f32.mrf.mxu0
        %v2373 = vadd.f32 0.0, %v2372
        %v2374 = vpop.f32.mrf.mxu0
        %2375 = vmatprep.mubr.bf16.mxu0 0
        %2376 = vmatmul.mubr.bf16.gmra.mxu0 %v1024
        %v2377 = vpop.f32.mrf.mxu0
        %v2378 = vadd.f32 0.0, %v2377
        %v2379 = vpop.f32.mrf.mxu0
        %v2380 = vpop.f32.mrf.mxu0
        %v2381 = vadd.f32 0.0, %v2380
        %v2382 = vpop.f32.mrf.mxu0
        %2383 = vmatprep.mubr.bf16.mxu0 0
        %2384 = vmatmul.mubr.bf16.gmra.mxu0 %v1027
        %v2385 = vpop.f32.mrf.mxu0
        %v2386 = vadd.f32 0.0, %v2385
        %v2387 = vpop.f32.mrf.mxu0
        %v2388 = vpop.f32.mrf.mxu0
        %v2389 = vadd.f32 0.0, %v2388
        %v2390 = vpop.f32.mrf.mxu0
        %2391 = vmatprep.mubr.bf16.mxu0 0
        %2392 = vmatmul.mubr.bf16.gmra.mxu0 %v1030
        %v2393 = vpop.f32.mrf.mxu0
        %v2394 = vadd.f32 0.0, %v2393
        %v2395 = vpop.f32.mrf.mxu0
        %v2396 = vpop.f32.mrf.mxu0
        %v2397 = vadd.f32 0.0, %v2396
        %v2398 = vpop.f32.mrf.mxu0
        %2399 = vmatprep.mubr.bf16.mxu0 0
        %2400 = vmatmul.mubr.bf16.gmra.mxu0 %v1033
        %v2401 = vpop.f32.mrf.mxu0
        %v2402 = vadd.f32 0.0, %v2401
        %v2403 = vpop.f32.mrf.mxu0
        %v2404 = vpop.f32.mrf.mxu0
        %v2405 = vadd.f32 0.0, %v2404
        %v2406 = vpop.f32.mrf.mxu0
        %2407 = vmatprep.mubr.bf16.mxu0 0
        %2408 = vmatmul.mubr.bf16.gmra.mxu0 %v1036
        %v2409 = vpop.f32.mrf.mxu0
        %v2410 = vadd.f32 0.0, %v2409
        %v2411 = vpop.f32.mrf.mxu0
        %v2412 = vpop.f32.mrf.mxu0
        %v2413 = vadd.f32 0.0, %v2412
        %v2414 = vpop.f32.mrf.mxu0
        %2415 = vmatprep.mubr.bf16.mxu0 0
        %2416 = vmatmul.mubr.bf16.gmra.mxu0 %v1039
        %v2417 = vpop.f32.mrf.mxu0
        %v2418 = vadd.f32 0.0, %v2417
        %v2419 = vpop.f32.mrf.mxu0
        %v2420 = vpop.f32.mrf.mxu0
        %v2421 = vadd.f32 0.0, %v2420
        %v2422 = vpop.f32.mrf.mxu0
        %2423 = vmatprep.mubr.bf16.mxu0 0
        %2424 = vmatmul.mubr.bf16.gmra.mxu0 %v1042
        %v2425 = vpop.f32.mrf.mxu0
        %v2426 = vadd.f32 0.0, %v2425
        %v2427 = vpop.f32.mrf.mxu0
        %v2428 = vpop.f32.mrf.mxu0
        %v2429 = vadd.f32 0.0, %v2428
        %v2430 = vpop.f32.mrf.mxu0
        %2431 = vmatprep.mubr.bf16.mxu0 0
        %2432 = vmatmul.mubr.bf16.gmra.mxu0 %v1045
        %v2433 = vpop.f32.mrf.mxu0
        %v2434 = vadd.f32 0.0, %v2433
        %v2435 = vpop.f32.mrf.mxu0
        %v2436 = vpop.f32.mrf.mxu0
        %v2437 = vadd.f32 0.0, %v2436
        %v2438 = vpop.f32.mrf.mxu0
        %2439 = vmatprep.mubr.bf16.mxu0 0
        %2440 = vmatmul.mubr.bf16.gmra.mxu0 %v1644
        %v2441 = vpop.f32.mrf.mxu0
        %v2442 = vadd.f32 0.0, %v2441
        %v2443 = vpop.f32.mrf.mxu0
        %v2444 = vpop.f32.mrf.mxu0
        %v2445 = vadd.f32 0.0, %v2444
        %v2446 = vpop.f32.mrf.mxu0
        %2447 = vmatprep.mubr.bf16.mxu0 0
        %2448 = vmatmul.mubr.bf16.gmra.mxu0 %v2290
        %v2449 = vpop.f32.mrf.mxu0
        %v2450 = vadd.f32 0.0, %v2449
        %v2451 = vpop.f32.mrf.mxu0
        %v2452 = vpop.f32.mrf.mxu0
        %v2453 = vadd.f32 0.0, %v2452
        %v2454 = vpop.f32.mrf.mxu0
        %2455 = vdwg.mxu0
        %v2456 = vadd.f32 %v2250, %v2330
        %v2457 = vadd.f32 %v2251, %v2333
        %v2458 = vadd.f32 %v2252, %v2338
        %v2459 = vadd.f32 %v2253, %v2341
        %v2460 = vadd.f32 %v2254, %v2346
        %v2461 = vadd.f32 %v2255, %v2349
        %v2462 = vadd.f32 %v2256, %v2354
        %v2463 = vadd.f32 %v2257, %v2357
        %v2464 = vadd.f32 %v2258, %v2362
        %v2465 = vadd.f32 %v2259, %v2365
        %v2466 = vadd.f32 %v2260, %v2370
        %v2467 = vadd.f32 %v2261, %v2373
        %v2468 = vadd.f32 %v2262, %v2378
        %v2469 = vadd.f32 %v2263, %v2381
        %v2470 = vadd.f32 %v2264, %v2386
        %v2471 = vadd.f32 %v2265, %v2389
        %v2472 = vadd.f32 %v2266, %v2394
        %v2473 = vadd.f32 %v2267, %v2397
        %v2474 = vadd.f32 %v2268, %v2402
        %v2475 = vadd.f32 %v2269, %v2405
        %v2476 = vadd.f32 %v2270, %v2410
        %v2477 = vadd.f32 %v2271, %v2413
        %v2478 = vadd.f32 %v2272, %v2418
        %v2479 = vadd.f32 %v2273, %v2421
        %v2480 = vadd.f32 %v2274, %v2426
        %v2481 = vadd.f32 %v2275, %v2429
        %v2482 = vadd.f32 %v2276, %v2434
        %v2483 = vadd.f32 %v2277, %v2437
        %v2484 = vadd.f32 %v2278, %v2442
        %v2485 = vadd.f32 %v2279, %v2445
        %v2486 = vadd.f32 %v2280, %v2450
        %v2487 = vadd.f32 %v2281, %v2453
        %v2489 = vshrl.u32 %v264, 16
        %v2491 = vrot.slane %v2489, 4
        %v2492 = vshll.u32 %v264, 16
        %v2494 = vrot.slane %v2492, 5
        %v2495 = vor.u32 %v2491, %v2494
        %v2496 = vrot.slane %v2495, 4
        %v2498 = vshll.u32 %v265, 16
        %v2500 = vrot.slane %v2498, 5
        %v2501 = vsel %vm270, %v2496, %v2500
        %v2502 = vshrl.u32 %v265, 16
        %v2504 = vrot.slane %v2502, 4
        %v2505 = vor.u32 %v2504, %v2500
        %v2506 = vrot.slane %v2505, 4
        %v2508 = vshll.u32 %v266, 16
        %v2510 = vrot.slane %v2508, 5
        %v2511 = vsel %vm270, %v2506, %v2510
        %s2512 = scalar_lea.vmem %s1, 28
        %v2513 = vld [vmem:[%s2512] sm:$0xf]
        %v2514 = vunpack.c.l.b16 %v2501
        %v2515 = vunpack.c.l.b16 %v2511
        %v2516 = vpack.c.b16 %v2515, %v2514
        %v2518 = vsel %vm705, %v2516, 0
        %v2521 = vsel %vm754, %v2513, 0
        %2523 = vmatprep.subr.bf16.mxu0 0
        %2524 = vmatpush1.bf16.msra.mxu0 0
        %2525 = vmatprep.subr.bf16.mxu0 0
        %2526 = vmatpush1.bf16.msra.mxu0 0
        %2527 = vmatprep.subr.bf16.mxu0 0
        %2528 = vmatpush1.bf16.msra.mxu0 0
        %2529 = vmatprep.subr.bf16.mxu0 0
        %2530 = vmatpush1.bf16.msra.mxu0 0
        %2531 = vmatprep.subr.bf16.mxu0 0
        %2532 = vmatpush1.bf16.msra.mxu0 0
        %2533 = vmatprep.subr.bf16.mxu0 0
        %2534 = vmatpush1.bf16.msra.mxu0 0
        %2535 = vmatprep.subr.bf16.mxu0 0
        %2536 = vmatpush1.bf16.msra.mxu0 0
        %2537 = vmatprep.subr.bf16.mxu0 0
        %2538 = vmatpush1.bf16.msra.mxu0 %v2521
        %2539 = vmatprep.subr.bf16.mxu0 0
        %2540 = vmatpush2.bf16.msra.mxu0 0
        %2541 = vmatprep.subr.bf16.mxu0 0
        %2542 = vmatpush2.bf16.msra.mxu0 0
        %2543 = vmatprep.subr.bf16.mxu0 0
        %2544 = vmatpush2.bf16.msra.mxu0 0
        %2545 = vmatprep.subr.bf16.mxu0 0
        %2546 = vmatpush2.bf16.msra.mxu0 0
        %2547 = vmatprep.subr.bf16.mxu0 0
        %2548 = vmatpush2.bf16.msra.mxu0 0
        %2549 = vmatprep.subr.bf16.mxu0 0
        %2550 = vmatpush2.bf16.msra.mxu0 0
        %2551 = vmatprep.subr.bf16.mxu0 0
        %2552 = vmatpush2.bf16.msra.mxu0 0
        %2553 = vmatprep.subr.bf16.mxu0 0
        %2554 = vmatpush2.bf16.msra.mxu0 0
        %2555 = vmatprep.mubr.bf16.mxu0 0
        %2556 = vmatmul.mubr.bf16.gmra.mxu0 %v713
        %v2557 = vpop.f32.mrf.mxu0
        %v2558 = vadd.f32 0.0, %v2557
        %v2559 = vpop.f32.mrf.mxu0
        %v2560 = vpop.f32.mrf.mxu0
        %v2561 = vadd.f32 0.0, %v2560
        %v2562 = vpop.f32.mrf.mxu0
        %2563 = vmatprep.mubr.bf16.mxu0 0
        %2564 = vmatmul.mubr.bf16.gmra.mxu0 %v716
        %v2565 = vpop.f32.mrf.mxu0
        %v2566 = vadd.f32 0.0, %v2565
        %v2567 = vpop.f32.mrf.mxu0
        %v2568 = vpop.f32.mrf.mxu0
        %v2569 = vadd.f32 0.0, %v2568
        %v2570 = vpop.f32.mrf.mxu0
        %2571 = vmatprep.mubr.bf16.mxu0 0
        %2572 = vmatmul.mubr.bf16.gmra.mxu0 %v719
        %v2573 = vpop.f32.mrf.mxu0
        %v2574 = vadd.f32 0.0, %v2573
        %v2575 = vpop.f32.mrf.mxu0
        %v2576 = vpop.f32.mrf.mxu0
        %v2577 = vadd.f32 0.0, %v2576
        %v2578 = vpop.f32.mrf.mxu0
        %2579 = vmatprep.mubr.bf16.mxu0 0
        %2580 = vmatmul.mubr.bf16.gmra.mxu0 %v722
        %v2581 = vpop.f32.mrf.mxu0
        %v2582 = vadd.f32 0.0, %v2581
        %v2583 = vpop.f32.mrf.mxu0
        %v2584 = vpop.f32.mrf.mxu0
        %v2585 = vadd.f32 0.0, %v2584
        %v2586 = vpop.f32.mrf.mxu0
        %2587 = vmatprep.mubr.bf16.mxu0 0
        %2588 = vmatmul.mubr.bf16.gmra.mxu0 %v725
        %v2589 = vpop.f32.mrf.mxu0
        %v2590 = vadd.f32 0.0, %v2589
        %v2591 = vpop.f32.mrf.mxu0
        %v2592 = vpop.f32.mrf.mxu0
        %v2593 = vadd.f32 0.0, %v2592
        %v2594 = vpop.f32.mrf.mxu0
        %2595 = vmatprep.mubr.bf16.mxu0 0
        %2596 = vmatmul.mubr.bf16.gmra.mxu0 %v728
        %v2597 = vpop.f32.mrf.mxu0
        %v2598 = vadd.f32 0.0, %v2597
        %v2599 = vpop.f32.mrf.mxu0
        %v2600 = vpop.f32.mrf.mxu0
        %v2601 = vadd.f32 0.0, %v2600
        %v2602 = vpop.f32.mrf.mxu0
        %2603 = vmatprep.mubr.bf16.mxu0 0
        %2604 = vmatmul.mubr.bf16.gmra.mxu0 %v731
        %v2605 = vpop.f32.mrf.mxu0
        %v2606 = vadd.f32 0.0, %v2605
        %v2607 = vpop.f32.mrf.mxu0
        %v2608 = vpop.f32.mrf.mxu0
        %v2609 = vadd.f32 0.0, %v2608
        %v2610 = vpop.f32.mrf.mxu0
        %2611 = vmatprep.mubr.bf16.mxu0 0
        %2612 = vmatmul.mubr.bf16.gmra.mxu0 %v734
        %v2613 = vpop.f32.mrf.mxu0
        %v2614 = vadd.f32 0.0, %v2613
        %v2615 = vpop.f32.mrf.mxu0
        %v2616 = vpop.f32.mrf.mxu0
        %v2617 = vadd.f32 0.0, %v2616
        %v2618 = vpop.f32.mrf.mxu0
        %2619 = vmatprep.mubr.bf16.mxu0 0
        %2620 = vmatmul.mubr.bf16.gmra.mxu0 %v737
        %v2621 = vpop.f32.mrf.mxu0
        %v2622 = vadd.f32 0.0, %v2621
        %v2623 = vpop.f32.mrf.mxu0
        %v2624 = vpop.f32.mrf.mxu0
        %v2625 = vadd.f32 0.0, %v2624
        %v2626 = vpop.f32.mrf.mxu0
        %2627 = vmatprep.mubr.bf16.mxu0 0
        %2628 = vmatmul.mubr.bf16.gmra.mxu0 %v740
        %v2629 = vpop.f32.mrf.mxu0
        %v2630 = vadd.f32 0.0, %v2629
        %v2631 = vpop.f32.mrf.mxu0
        %v2632 = vpop.f32.mrf.mxu0
        %v2633 = vadd.f32 0.0, %v2632
        %v2634 = vpop.f32.mrf.mxu0
        %2635 = vmatprep.mubr.bf16.mxu0 0
        %2636 = vmatmul.mubr.bf16.gmra.mxu0 %v743
        %v2637 = vpop.f32.mrf.mxu0
        %v2638 = vadd.f32 0.0, %v2637
        %v2639 = vpop.f32.mrf.mxu0
        %v2640 = vpop.f32.mrf.mxu0
        %v2641 = vadd.f32 0.0, %v2640
        %v2642 = vpop.f32.mrf.mxu0
        %2643 = vmatprep.mubr.bf16.mxu0 0
        %2644 = vmatmul.mubr.bf16.gmra.mxu0 %v746
        %v2645 = vpop.f32.mrf.mxu0
        %v2646 = vadd.f32 0.0, %v2645
        %v2647 = vpop.f32.mrf.mxu0
        %v2648 = vpop.f32.mrf.mxu0
        %v2649 = vadd.f32 0.0, %v2648
        %v2650 = vpop.f32.mrf.mxu0
        %2651 = vmatprep.mubr.bf16.mxu0 0
        %2652 = vmatmul.mubr.bf16.gmra.mxu0 %v749
        %v2653 = vpop.f32.mrf.mxu0
        %v2654 = vadd.f32 0.0, %v2653
        %v2655 = vpop.f32.mrf.mxu0
        %v2656 = vpop.f32.mrf.mxu0
        %v2657 = vadd.f32 0.0, %v2656
        %v2658 = vpop.f32.mrf.mxu0
        %2659 = vmatprep.mubr.bf16.mxu0 0
        %2660 = vmatmul.mubr.bf16.gmra.mxu0 %v752
        %v2661 = vpop.f32.mrf.mxu0
        %v2662 = vadd.f32 0.0, %v2661
        %v2663 = vpop.f32.mrf.mxu0
        %v2664 = vpop.f32.mrf.mxu0
        %v2665 = vadd.f32 0.0, %v2664
        %v2666 = vpop.f32.mrf.mxu0
        %2667 = vmatprep.mubr.bf16.mxu0 0
        %2668 = vmatmul.mubr.bf16.gmra.mxu0 %v1872
        %v2669 = vpop.f32.mrf.mxu0
        %v2670 = vadd.f32 0.0, %v2669
        %v2671 = vpop.f32.mrf.mxu0
        %v2672 = vpop.f32.mrf.mxu0
        %v2673 = vadd.f32 0.0, %v2672
        %v2674 = vpop.f32.mrf.mxu0
        %2675 = vmatprep.mubr.bf16.mxu0 0
        %2676 = vmatmul.mubr.bf16.gmra.mxu0 %v2518
        %v2677 = vpop.f32.mrf.mxu0
        %v2678 = vadd.f32 0.0, %v2677
        %v2679 = vpop.f32.mrf.mxu0
        %v2680 = vpop.f32.mrf.mxu0
        %v2681 = vadd.f32 0.0, %v2680
        %v2682 = vpop.f32.mrf.mxu0
        %2683 = vdwg.mxu0
        %v2684 = vadd.f32 %v2456, %v2558
        %v2685 = vadd.f32 %v2457, %v2561
        %v2686 = vadd.f32 %v2458, %v2566
        %v2687 = vadd.f32 %v2459, %v2569
        %v2688 = vadd.f32 %v2460, %v2574
        %v2689 = vadd.f32 %v2461, %v2577
        %v2690 = vadd.f32 %v2462, %v2582
        %v2691 = vadd.f32 %v2463, %v2585
        %v2692 = vadd.f32 %v2464, %v2590
        %v2693 = vadd.f32 %v2465, %v2593
        %v2694 = vadd.f32 %v2466, %v2598
        %v2695 = vadd.f32 %v2467, %v2601
        %v2696 = vadd.f32 %v2468, %v2606
        %v2697 = vadd.f32 %v2469, %v2609
        %v2698 = vadd.f32 %v2470, %v2614
        %v2699 = vadd.f32 %v2471, %v2617
        %v2700 = vadd.f32 %v2472, %v2622
        %v2701 = vadd.f32 %v2473, %v2625
        %v2702 = vadd.f32 %v2474, %v2630
        %v2703 = vadd.f32 %v2475, %v2633
        %v2704 = vadd.f32 %v2476, %v2638
        %v2705 = vadd.f32 %v2477, %v2641
        %v2706 = vadd.f32 %v2478, %v2646
        %v2707 = vadd.f32 %v2479, %v2649
        %v2708 = vadd.f32 %v2480, %v2654
        %v2709 = vadd.f32 %v2481, %v2657
        %v2710 = vadd.f32 %v2482, %v2662
        %v2711 = vadd.f32 %v2483, %v2665
        %v2712 = vadd.f32 %v2484, %v2670
        %v2713 = vadd.f32 %v2485, %v2673
        %v2714 = vadd.f32 %v2486, %v2678
        %v2715 = vadd.f32 %v2487, %v2681
        %v2717 = vrot.slane %v264, 5
        %v2718 = vrot.slane %v2717, 4
        %v2719 = vrot.slane %v265, 5
        %v2720 = vsel %vm1229, %v2718, %v2719
        %v2721 = vrot.slane %v2719, 4
        %v2722 = vrot.slane %v266, 5
        %v2723 = vsel %vm1229, %v2721, %v2722
        %s2724 = scalar_lea.vmem %s1, 32
        %v2725 = vld [vmem:[%s2724] sm:$0xf]
        %v2726 = vunpack.c.l.b16 %v2720
        %v2727 = vunpack.c.l.b16 %v2723
        %v2728 = vpack.c.b16 %v2727, %v2726
        %v2730 = vsel %vm705, %v2728, 0
        %v2733 = vsel %vm754, %v2725, 0
        %2735 = vmatprep.subr.bf16.mxu0 0
        %2736 = vmatpush1.bf16.msra.mxu0 0
        %2737 = vmatprep.subr.bf16.mxu0 0
        %2738 = vmatpush1.bf16.msra.mxu0 0
        %2739 = vmatprep.subr.bf16.mxu0 0
        %2740 = vmatpush1.bf16.msra.mxu0 0
        %2741 = vmatprep.subr.bf16.mxu0 0
        %2742 = vmatpush1.bf16.msra.mxu0 0
        %2743 = vmatprep.subr.bf16.mxu0 0
        %2744 = vmatpush1.bf16.msra.mxu0 0
        %2745 = vmatprep.subr.bf16.mxu0 0
        %2746 = vmatpush1.bf16.msra.mxu0 0
        %2747 = vmatprep.subr.bf16.mxu0 0
        %2748 = vmatpush1.bf16.msra.mxu0 0
        %2749 = vmatprep.subr.bf16.mxu0 0
        %2750 = vmatpush1.bf16.msra.mxu0 %v2733
        %2751 = vmatprep.subr.bf16.mxu0 0
        %2752 = vmatpush2.bf16.msra.mxu0 0
        %2753 = vmatprep.subr.bf16.mxu0 0
        %2754 = vmatpush2.bf16.msra.mxu0 0
        %2755 = vmatprep.subr.bf16.mxu0 0
        %2756 = vmatpush2.bf16.msra.mxu0 0
        %2757 = vmatprep.subr.bf16.mxu0 0
        %2758 = vmatpush2.bf16.msra.mxu0 0
        %2759 = vmatprep.subr.bf16.mxu0 0
        %2760 = vmatpush2.bf16.msra.mxu0 0
        %2761 = vmatprep.subr.bf16.mxu0 0
        %2762 = vmatpush2.bf16.msra.mxu0 0
        %2763 = vmatprep.subr.bf16.mxu0 0
        %2764 = vmatpush2.bf16.msra.mxu0 0
        %2765 = vmatprep.subr.bf16.mxu0 0
        %2766 = vmatpush2.bf16.msra.mxu0 0
        %2767 = vmatprep.mubr.bf16.mxu0 0
        %2768 = vmatmul.mubr.bf16.gmra.mxu0 %v1399
        %v2769 = vpop.f32.mrf.mxu0
        %v2770 = vadd.f32 0.0, %v2769
        %v2771 = vpop.f32.mrf.mxu0
        %v2772 = vpop.f32.mrf.mxu0
        %v2773 = vadd.f32 0.0, %v2772
        %v2774 = vpop.f32.mrf.mxu0
        %2775 = vmatprep.mubr.bf16.mxu0 0
        %2776 = vmatmul.mubr.bf16.gmra.mxu0 %v1402
        %v2777 = vpop.f32.mrf.mxu0
        %v2778 = vadd.f32 0.0, %v2777
        %v2779 = vpop.f32.mrf.mxu0
        %v2780 = vpop.f32.mrf.mxu0
        %v2781 = vadd.f32 0.0, %v2780
        %v2782 = vpop.f32.mrf.mxu0
        %2783 = vmatprep.mubr.bf16.mxu0 0
        %2784 = vmatmul.mubr.bf16.gmra.mxu0 %v1405
        %v2785 = vpop.f32.mrf.mxu0
        %v2786 = vadd.f32 0.0, %v2785
        %v2787 = vpop.f32.mrf.mxu0
        %v2788 = vpop.f32.mrf.mxu0
        %v2789 = vadd.f32 0.0, %v2788
        %v2790 = vpop.f32.mrf.mxu0
        %2791 = vmatprep.mubr.bf16.mxu0 0
        %2792 = vmatmul.mubr.bf16.gmra.mxu0 %v1408
        %v2793 = vpop.f32.mrf.mxu0
        %v2794 = vadd.f32 0.0, %v2793
        %v2795 = vpop.f32.mrf.mxu0
        %v2796 = vpop.f32.mrf.mxu0
        %v2797 = vadd.f32 0.0, %v2796
        %v2798 = vpop.f32.mrf.mxu0
        %2799 = vmatprep.mubr.bf16.mxu0 0
        %2800 = vmatmul.mubr.bf16.gmra.mxu0 %v1411
        %v2801 = vpop.f32.mrf.mxu0
        %v2802 = vadd.f32 0.0, %v2801
        %v2803 = vpop.f32.mrf.mxu0
        %v2804 = vpop.f32.mrf.mxu0
        %v2805 = vadd.f32 0.0, %v2804
        %v2806 = vpop.f32.mrf.mxu0
        %2807 = vmatprep.mubr.bf16.mxu0 0
        %2808 = vmatmul.mubr.bf16.gmra.mxu0 %v1414
        %v2809 = vpop.f32.mrf.mxu0
        %v2810 = vadd.f32 0.0, %v2809
        %v2811 = vpop.f32.mrf.mxu0
        %v2812 = vpop.f32.mrf.mxu0
        %v2813 = vadd.f32 0.0, %v2812
        %v2814 = vpop.f32.mrf.mxu0
        %2815 = vmatprep.mubr.bf16.mxu0 0
        %2816 = vmatmul.mubr.bf16.gmra.mxu0 %v1417
        %v2817 = vpop.f32.mrf.mxu0
        %v2818 = vadd.f32 0.0, %v2817
        %v2819 = vpop.f32.mrf.mxu0
        %v2820 = vpop.f32.mrf.mxu0
        %v2821 = vadd.f32 0.0, %v2820
        %v2822 = vpop.f32.mrf.mxu0
        %2823 = vmatprep.mubr.bf16.mxu0 0
        %2824 = vmatmul.mubr.bf16.gmra.mxu0 %v1420
        %v2825 = vpop.f32.mrf.mxu0
        %v2826 = vadd.f32 0.0, %v2825
        %v2827 = vpop.f32.mrf.mxu0
        %v2828 = vpop.f32.mrf.mxu0
        %v2829 = vadd.f32 0.0, %v2828
        %v2830 = vpop.f32.mrf.mxu0
        %2831 = vmatprep.mubr.bf16.mxu0 0
        %2832 = vmatmul.mubr.bf16.gmra.mxu0 %v1423
        %v2833 = vpop.f32.mrf.mxu0
        %v2834 = vadd.f32 0.0, %v2833
        %v2835 = vpop.f32.mrf.mxu0
        %v2836 = vpop.f32.mrf.mxu0
        %v2837 = vadd.f32 0.0, %v2836
        %v2838 = vpop.f32.mrf.mxu0
        %2839 = vmatprep.mubr.bf16.mxu0 0
        %2840 = vmatmul.mubr.bf16.gmra.mxu0 %v1426
        %v2841 = vpop.f32.mrf.mxu0
        %v2842 = vadd.f32 0.0, %v2841
        %v2843 = vpop.f32.mrf.mxu0
        %v2844 = vpop.f32.mrf.mxu0
        %v2845 = vadd.f32 0.0, %v2844
        %v2846 = vpop.f32.mrf.mxu0
        %2847 = vmatprep.mubr.bf16.mxu0 0
        %2848 = vmatmul.mubr.bf16.gmra.mxu0 %v1429
        %v2849 = vpop.f32.mrf.mxu0
        %v2850 = vadd.f32 0.0, %v2849
        %v2851 = vpop.f32.mrf.mxu0
        %v2852 = vpop.f32.mrf.mxu0
        %v2853 = vadd.f32 0.0, %v2852
        %v2854 = vpop.f32.mrf.mxu0
        %2855 = vmatprep.mubr.bf16.mxu0 0
        %2856 = vmatmul.mubr.bf16.gmra.mxu0 %v1432
        %v2857 = vpop.f32.mrf.mxu0
        %v2858 = vadd.f32 0.0, %v2857
        %v2859 = vpop.f32.mrf.mxu0
        %v2860 = vpop.f32.mrf.mxu0
        %v2861 = vadd.f32 0.0, %v2860
        %v2862 = vpop.f32.mrf.mxu0
        %2863 = vmatprep.mubr.bf16.mxu0 0
        %2864 = vmatmul.mubr.bf16.gmra.mxu0 %v1435
        %v2865 = vpop.f32.mrf.mxu0
        %v2866 = vadd.f32 0.0, %v2865
        %v2867 = vpop.f32.mrf.mxu0
        %v2868 = vpop.f32.mrf.mxu0
        %v2869 = vadd.f32 0.0, %v2868
        %v2870 = vpop.f32.mrf.mxu0
        %2871 = vmatprep.mubr.bf16.mxu0 0
        %2872 = vmatmul.mubr.bf16.gmra.mxu0 %v1438
        %v2873 = vpop.f32.mrf.mxu0
        %v2874 = vadd.f32 0.0, %v2873
        %v2875 = vpop.f32.mrf.mxu0
        %v2876 = vpop.f32.mrf.mxu0
        %v2877 = vadd.f32 0.0, %v2876
        %v2878 = vpop.f32.mrf.mxu0
        %2879 = vmatprep.mubr.bf16.mxu0 0
        %2880 = vmatmul.mubr.bf16.gmra.mxu0 %v2084
        %v2881 = vpop.f32.mrf.mxu0
        %v2882 = vadd.f32 0.0, %v2881
        %v2883 = vpop.f32.mrf.mxu0
        %v2884 = vpop.f32.mrf.mxu0
        %v2885 = vadd.f32 0.0, %v2884
        %v2886 = vpop.f32.mrf.mxu0
        %2887 = vmatprep.mubr.bf16.mxu0 0
        %2888 = vmatmul.mubr.bf16.gmra.mxu0 %v2730
        %v2889 = vpop.f32.mrf.mxu0
        %v2890 = vadd.f32 0.0, %v2889
        %v2891 = vpop.f32.mrf.mxu0
        %v2892 = vpop.f32.mrf.mxu0
        %v2893 = vadd.f32 0.0, %v2892
        %v2894 = vpop.f32.mrf.mxu0
        %2895 = vdwg.mxu0
        %v2896 = vadd.f32 %v2684, %v2770
        %v2897 = vadd.f32 %v2685, %v2773
        %v2898 = vadd.f32 %v2686, %v2778
        %v2899 = vadd.f32 %v2687, %v2781
        %v2900 = vadd.f32 %v2688, %v2786
        %v2901 = vadd.f32 %v2689, %v2789
        %v2902 = vadd.f32 %v2690, %v2794
        %v2903 = vadd.f32 %v2691, %v2797
        %v2904 = vadd.f32 %v2692, %v2802
        %v2905 = vadd.f32 %v2693, %v2805
        %v2906 = vadd.f32 %v2694, %v2810
        %v2907 = vadd.f32 %v2695, %v2813
        %v2908 = vadd.f32 %v2696, %v2818
        %v2909 = vadd.f32 %v2697, %v2821
        %v2910 = vadd.f32 %v2698, %v2826
        %v2911 = vadd.f32 %v2699, %v2829
        %v2912 = vadd.f32 %v2700, %v2834
        %v2913 = vadd.f32 %v2701, %v2837
        %v2914 = vadd.f32 %v2702, %v2842
        %v2915 = vadd.f32 %v2703, %v2845
        %v2916 = vadd.f32 %v2704, %v2850
        %v2917 = vadd.f32 %v2705, %v2853
        %v2918 = vadd.f32 %v2706, %v2858
        %v2919 = vadd.f32 %v2707, %v2861
        %v2920 = vadd.f32 %v2708, %v2866
        %v2921 = vadd.f32 %v2709, %v2869
        %v2922 = vadd.f32 %v2710, %v2874
        %v2923 = vadd.f32 %v2711, %v2877
        %v2924 = vadd.f32 %v2712, %v2882
        %v2925 = vadd.f32 %v2713, %v2885
        %v2926 = vadd.f32 %v2714, %v2890
        %v2927 = vadd.f32 %v2715, %v2893
        %v2928 = vadd.f32 %v2896, %v2897
        %v2929 = vadd.f32 %v2928, %v2898
        %v2930 = vadd.f32 %v2929, %v2899
        %v2931 = vadd.f32 %v2930, %v2900
        %v2932 = vadd.f32 %v2931, %v2901
        %v2933 = vadd.f32 %v2932, %v2902
        %v2934 = vadd.f32 %v2933, %v2903
        %v2935 = vadd.f32 %v2934, %v2904
        %v2936 = vadd.f32 %v2935, %v2905
        %v2937 = vadd.f32 %v2936, %v2906
        %v2938 = vadd.f32 %v2937, %v2907
        %v2939 = vadd.f32 %v2938, %v2908
        %v2940 = vadd.f32 %v2939, %v2909
        %v2941 = vadd.f32 %v2940, %v2910
        %v2942 = vadd.f32 %v2941, %v2911
        %v2943 = vadd.f32 %v2942, %v2912
        %v2944 = vadd.f32 %v2943, %v2913
        %v2945 = vadd.f32 %v2944, %v2914
        %v2946 = vadd.f32 %v2945, %v2915
        %v2947 = vadd.f32 %v2946, %v2916
        %v2948 = vadd.f32 %v2947, %v2917
        %v2949 = vadd.f32 %v2948, %v2918
        %v2950 = vadd.f32 %v2949, %v2919
        %v2951 = vadd.f32 %v2950, %v2920
        %v2952 = vadd.f32 %v2951, %v2921
        %v2953 = vadd.f32 %v2952, %v2922
        %v2954 = vadd.f32 %v2953, %v2923
        %v2955 = vadd.f32 %v2954, %v2924
        %v2956 = vadd.f32 %v2955, %v2925
        %v2957 = vadd.f32 %v2956, %v2926
        %v2958 = vadd.f32 %v2957, %v2927
        %v2959 = vrot.slane %v2958, 4
        %v2960 = vadd.f32 %v2958, %v2959
        %v2961 = vrot.slane %v2960, 2
        %v2962 = vadd.f32 %v2960, %v2961
        %v2963 = vrot.slane %v2962, 1
        %v2964 = vadd.f32 %v2962, %v2963
        %vm2965 = vcmask 57344
        %2966 = vst.msk [vmem:[%s200] sm:$0x1] %vm2965, %v2964
        %v2967 = vmul.f32 %v2896, %v2896
        %v2968 = vmul.f32 %v2897, %v2897
        %v2969 = vmul.f32 %v2898, %v2898
        %v2970 = vmul.f32 %v2899, %v2899
        %v2971 = vmul.f32 %v2900, %v2900
        %v2972 = vmul.f32 %v2901, %v2901
        %v2973 = vmul.f32 %v2902, %v2902
        %v2974 = vmul.f32 %v2903, %v2903
        %v2975 = vmul.f32 %v2904, %v2904
        %v2976 = vmul.f32 %v2905, %v2905
        %v2977 = vmul.f32 %v2906, %v2906
        %v2978 = vmul.f32 %v2907, %v2907
        %v2979 = vmul.f32 %v2908, %v2908
        %v2980 = vmul.f32 %v2909, %v2909
        %v2981 = vmul.f32 %v2910, %v2910
        %v2982 = vmul.f32 %v2911, %v2911
        %v2983 = vmul.f32 %v2912, %v2912
        %v2984 = vmul.f32 %v2913, %v2913
        %v2985 = vmul.f32 %v2914, %v2914
        %v2986 = vmul.f32 %v2915, %v2915
        %v2987 = vmul.f32 %v2916, %v2916
        %v2988 = vmul.f32 %v2917, %v2917
        %v2989 = vmul.f32 %v2918, %v2918
        %v2990 = vmul.f32 %v2919, %v2919
        %v2991 = vmul.f32 %v2920, %v2920
        %v2992 = vmul.f32 %v2921, %v2921
        %v2993 = vmul.f32 %v2922, %v2922
        %v2994 = vmul.f32 %v2923, %v2923
        %v2995 = vmul.f32 %v2924, %v2924
        %v2996 = vmul.f32 %v2925, %v2925
        %v2997 = vmul.f32 %v2926, %v2926
        %v2998 = vmul.f32 %v2927, %v2927
        %v2999 = vadd.f32 %v2967, %v2968
        %v3000 = vadd.f32 %v2999, %v2969
        %v3001 = vadd.f32 %v3000, %v2970
        %v3002 = vadd.f32 %v3001, %v2971
        %v3003 = vadd.f32 %v3002, %v2972
        %v3004 = vadd.f32 %v3003, %v2973
        %v3005 = vadd.f32 %v3004, %v2974
        %v3006 = vadd.f32 %v3005, %v2975
        %v3007 = vadd.f32 %v3006, %v2976
        %v3008 = vadd.f32 %v3007, %v2977
        %v3009 = vadd.f32 %v3008, %v2978
        %v3010 = vadd.f32 %v3009, %v2979
        %v3011 = vadd.f32 %v3010, %v2980
        %v3012 = vadd.f32 %v3011, %v2981
        %v3013 = vadd.f32 %v3012, %v2982
        %v3014 = vadd.f32 %v3013, %v2983
        %v3015 = vadd.f32 %v3014, %v2984
        %v3016 = vadd.f32 %v3015, %v2985
        %v3017 = vadd.f32 %v3016, %v2986
        %v3018 = vadd.f32 %v3017, %v2987
        %v3019 = vadd.f32 %v3018, %v2988
        %v3020 = vadd.f32 %v3019, %v2989
        %v3021 = vadd.f32 %v3020, %v2990
        %v3022 = vadd.f32 %v3021, %v2991
        %v3023 = vadd.f32 %v3022, %v2992
        %v3024 = vadd.f32 %v3023, %v2993
        %v3025 = vadd.f32 %v3024, %v2994
        %v3026 = vadd.f32 %v3025, %v2995
        %v3027 = vadd.f32 %v3026, %v2996
        %v3028 = vadd.f32 %v3027, %v2997
        %v3029 = vadd.f32 %v3028, %v2998
        %v3030 = vrot.slane %v3029, 4
        %v3031 = vadd.f32 %v3029, %v3030
        %v3032 = vrot.slane %v3031, 2
        %v3033 = vadd.f32 %v3031, %v3032
        %v3034 = vrot.slane %v3033, 1
        %v3035 = vadd.f32 %v3033, %v3034
        %3036 = vst.msk [vmem:[%s206] sm:$0x1] %vm2965, %v3035
        %3037 = vxpose.xlu0.b32.start [1/16] %v2896, 128
        %3038 = vxpose.xlu0.b32.cont [2/16] %v2897, 128
        %3039 = vxpose.xlu0.b32.cont [3/16] %v2898, 128
        %3040 = vxpose.xlu0.b32.cont [4/16] %v2899, 128
        %3041 = vxpose.xlu0.b32.cont [5/16] %v2900, 128
        %3042 = vxpose.xlu0.b32.cont [6/16] %v2901, 128
        %3043 = vxpose.xlu0.b32.cont [7/16] %v2902, 128
        %3044 = vxpose.xlu0.b32.cont [8/16] %v2903, 128
        %3045 = vxpose.xlu0.b32.cont [9/16] %v2904, 128
        %3046 = vxpose.xlu0.b32.cont [10/16] %v2905, 128
        %3047 = vxpose.xlu0.b32.cont [11/16] %v2906, 128
        %3048 = vxpose.xlu0.b32.cont [12/16] %v2907, 128
        %3049 = vxpose.xlu0.b32.cont [13/16] %v2908, 128
        %3050 = vxpose.xlu0.b32.cont [14/16] %v2909, 128
        %3051 = vxpose.xlu0.b32.cont [15/16] %v2910, 128
        %3052 = vxpose.xlu0.b32.end [16/16] %v2911, 128
        %v3053 = vpop.trf.xlu0
        %v3054 = vpop.trf.xlu0
        %v3055 = vpop.trf.xlu0
        %v3056 = vpop.trf.xlu0
        %v3057 = vpop.trf.xlu0
        %v3058 = vpop.trf.xlu0
        %v3059 = vpop.trf.xlu0
        %v3060 = vpop.trf.xlu0
        %v3061 = vpop.trf.xlu0
        %v3062 = vpop.trf.xlu0
        %v3063 = vpop.trf.xlu0
        %v3064 = vpop.trf.xlu0
        %v3065 = vpop.trf.xlu0
        %v3066 = vpop.trf.xlu0
        %v3067 = vpop.trf.xlu0
        %v3068 = vpop.trf.xlu0
        %3069 = vxpose.xlu0.b32.start [1/16] %v2912, 128
        %3070 = vxpose.xlu0.b32.cont [2/16] %v2913, 128
        %3071 = vxpose.xlu0.b32.cont [3/16] %v2914, 128
        %3072 = vxpose.xlu0.b32.cont [4/16] %v2915, 128
        %3073 = vxpose.xlu0.b32.cont [5/16] %v2916, 128
        %3074 = vxpose.xlu0.b32.cont [6/16] %v2917, 128
        %3075 = vxpose.xlu0.b32.cont [7/16] %v2918, 128
        %3076 = vxpose.xlu0.b32.cont [8/16] %v2919, 128
        %3077 = vxpose.xlu0.b32.cont [9/16] %v2920, 128
        %3078 = vxpose.xlu0.b32.cont [10/16] %v2921, 128
        %3079 = vxpose.xlu0.b32.cont [11/16] %v2922, 128
        %3080 = vxpose.xlu0.b32.cont [12/16] %v2923, 128
        %3081 = vxpose.xlu0.b32.cont [13/16] %v2924, 128
        %3082 = vxpose.xlu0.b32.cont [14/16] %v2925, 128
        %3083 = vxpose.xlu0.b32.cont [15/16] %v2926, 128
        %3084 = vxpose.xlu0.b32.end [16/16] %v2927, 128
        %v3085 = vpop.trf.xlu0
        %v3086 = vpop.trf.xlu0
        %v3087 = vpop.trf.xlu0
        %v3088 = vpop.trf.xlu0
        %v3089 = vpop.trf.xlu0
        %v3090 = vpop.trf.xlu0
        %v3091 = vpop.trf.xlu0
        %v3092 = vpop.trf.xlu0
        %v3093 = vpop.trf.xlu0
        %v3094 = vpop.trf.xlu0
        %v3095 = vpop.trf.xlu0
        %v3096 = vpop.trf.xlu0
        %v3097 = vpop.trf.xlu0
        %v3098 = vpop.trf.xlu0
        %v3099 = vpop.trf.xlu0
        %v3100 = vpop.trf.xlu0
        %v3101 = vpack.c.bf16 %v3053, %v3053
        %v3102 = vpack.c.bf16 %v3085, %v3085
        %v3105 = vunpack.c.l.b16 %v3101
        %v3106 = vunpack.c.l.b16 %v3102
        %v3107 = vpack.c.b16 %v3106, %v3105
        %3109 = vst [vmem:[%s194] sm:$0xff] %v3107
        %s3110 = sand.u32 %s77, 1
        %s3111 = scalar_lea.sflag [#allocation3], %s3110
        %s3112 = sand.u32 %s77, 1
        %s3113 = smul.addr %s3112, 8
        %s3114 = scalar_lea.vmem [#allocation2], %s3113
        %s3115 = sand.u32 %s22, 1
        %s3116 = scalar_lea.sflag [#allocation5], %s3115
        %s3117 = sand.u32 %s103, 1
        %s3118 = scalar_lea.vmem [#allocation4], %s3117
        %s3119 = sand.u32 %s22, 1
        %s3120 = scalar_lea.sflag [#allocation5], %s3119
        %s3121 = sand.u32 %s129, 1
        %s3122 = scalar_lea.vmem [#allocation6], %s3121
        // Predicated region
        $region29: #{tpu_custom_call.1} parent=27 // pred_check
          %p3123 = pneg %p87
        $region30: #{tpu_custom_call.1} parent=27 // pred_check_branch
          %3125 = sbr.rel (%p3123) target = $region32
        $region31: #{tpu_custom_call.1} parent=27 // pred_region
          %s3127 = ssub.s32 128, 128
          %3128 = vsyncadd %s3111, %s3127
          %s3129 = smul.addr %s22, 2
          %s3130 = smul.addr %s3129, 64
          %s3131 = scalar_lea.hbm %s2, %s3130
          %s3133 = sshll.u32 %s3114, 4
          %s3134 = int_to_ptr.vmem [resolvable:$true] %s3133
          %3136 = dma.vmem_to_hbm [thread:$0]  %s3134, 128, %s3131, %s3111
        $region32: #{tpu_custom_call.1} parent=27 // pred_fallthru
          _
        // Predicated region
        $region33: #{tpu_custom_call.1} parent=27 // pred_check
          %p3137 = pneg %p113
        $region34: #{tpu_custom_call.1} parent=27 // pred_check_branch
          %3139 = sbr.rel (%p3137) target = $region36
        $region35: #{tpu_custom_call.1} parent=27 // pred_region
          %s3141 = ssub.s32 16, 16
          %3142 = vsyncadd %s3116, %s3141
          %s3143 = smul.addr %s22, 16
          %s3144 = scalar_lea.hbm %s3, %s3143
          %s3146 = sshll.u32 %s3118, 4
          %s3147 = int_to_ptr.vmem [resolvable:$true] %s3146
          %3149 = dma.vmem_to_hbm [thread:$0]  %s3147, 16, %s3144, %s3116
        $region36: #{tpu_custom_call.1} parent=27 // pred_fallthru
          _
        // Predicated region
        $region37: #{tpu_custom_call.1} parent=27 // pred_check
          %p3150 = pneg %p139
        $region38: #{tpu_custom_call.1} parent=27 // pred_check_branch
          %3152 = sbr.rel (%p3150) target = $region40
        $region39: #{tpu_custom_call.1} parent=27 // pred_region
          %s3154 = ssub.s32 16, 16
          %3155 = vsyncadd %s3120, %s3154
          %s3156 = smul.addr %s22, 16
          %s3157 = scalar_lea.hbm %s4, %s3156
          %s3159 = sshll.u32 %s3122, 4
          %s3160 = int_to_ptr.vmem [resolvable:$true] %s3159
          %3162 = dma.vmem_to_hbm [thread:$0]  %s3160, 16, %s3157, %s3120
        $region40: #{tpu_custom_call.1} parent=27 // pred_fallthru
          _
      $region28: #{tpu_custom_call.1} parent=5 // pred_fallthru
        _
      %p3163 = scmp.le.s32.totalorder 2, %s17
      // Predicated region
      $region41: #{tpu_custom_call.1} parent=5 // pred_check
        %p3164 = pneg %p3163
      $region42: #{tpu_custom_call.1} parent=5 // pred_check_branch
        %3166 = sbr.rel (%p3164) target = $region44
      $region43: #{tpu_custom_call.1} parent=5 // pred_region
        %s3167 = ssub.s32 %s17, 2
        // Predicated region
        $region45: #{tpu_custom_call.1} parent=43 // pred_check
          %p3168 = pneg %p93
        $region46: #{tpu_custom_call.1} parent=43 // pred_check_branch
          %3170 = sbr.rel (%p3168) target = $region48
        $region47: #{tpu_custom_call.1} parent=43 // pred_region
          %s3171 = sand.u32 %s78, 1
          %s3172 = scalar_lea.sflag [#allocation3], %s3171
          %s3173 = sand.u32 %s78, 1
          %s3174 = smul.addr %s3173, 8
          %s3175 = scalar_lea.vmem [#allocation2], %s3174
          %3176 = dma.done %s3172, 128
        $region48: #{tpu_custom_call.1} parent=43 // pred_fallthru
          _
        // Predicated region
        $region49: #{tpu_custom_call.1} parent=43 // pred_check
          %p3177 = pneg %p119
        $region50: #{tpu_custom_call.1} parent=43 // pred_check_branch
          %3179 = sbr.rel (%p3177) target = $region52
        $region51: #{tpu_custom_call.1} parent=43 // pred_region
          %s3180 = sand.u32 %s23, 1
          %s3181 = scalar_lea.sflag [#allocation5], %s3180
          %s3182 = sand.u32 %s104, 1
          %s3183 = scalar_lea.vmem [#allocation4], %s3182
          %3184 = dma.done %s3181, 16
        $region52: #{tpu_custom_call.1} parent=43 // pred_fallthru
          _
        // Predicated region
        $region53: #{tpu_custom_call.1} parent=43 // pred_check
          %p3185 = pneg %p145
        $region54: #{tpu_custom_call.1} parent=43 // pred_check_branch
          %3187 = sbr.rel (%p3185) target = $region56
        $region55: #{tpu_custom_call.1} parent=43 // pred_region
          %s3188 = sand.u32 %s23, 1
          %s3189 = scalar_lea.sflag [#allocation5], %s3188
          %s3190 = sand.u32 %s130, 1
          %s3191 = scalar_lea.vmem [#allocation6], %s3190
          %3192 = dma.done %s3189, 16
        $region56: #{tpu_custom_call.1} parent=43 // pred_fallthru
          _
      $region44: #{tpu_custom_call.1} parent=5 // pred_fallthru
        _
    $region6: #{tpu_custom_call.1} parent=1 // loop_footer
      %s21 = sadd.s32 1, %s17
    $region7: #{tpu_custom_call.1} parent=1 // loop_footer_branch
      %16 = sbr.rel target = $region3
    $region8: #{tpu_custom_call.1} parent=1 // loop_exit
      _
    %3193 = vsyncpa [#allocation3], 1
    %s3194 = scalar_lea.sflag [#allocation3], 1
    %3195 = vsyncpa %s3194, 1
    %3196 = vsyncpa [#allocation5], 1
    %s3197 = scalar_lea.sflag [#allocation5], 1
    %3198 = vsyncpa %s3197, 1

</llo_original>
